<compile_context>
chip_gen: v7x
topology: tpu7x:2x2x1
jax: 0.10.0
libtpu: 0.0.40
codegen_flags: <defaults>
</compile_context>

<pallas_src>
import functools

import jax
import jax.numpy as jnp
from jax.experimental import pallas as pl
from jax.experimental.pallas import tpu as pltpu


def _shared_fc_kernel(*refs, widths, tn, residual, num_modalities):
    """refs = (x_0..x_{M-1}, weight, bias, out[, xcat_scratch]).

    x_m   : [TM, d_m]    activation tile of modality m (constant along j)
    weight: [D_in, TN]   full-K weight column block
    bias  : [1, TN]
    out   : [TM, TN]
    xcat  : [TM, D_in]   VMEM scratch holding concat_m(x_m) (only when M > 1)

    out = concat_m(x_m) @ weight + bias  (+ concat_m(x_m)[:, cols] if residual)
    """
    M = num_modalities
    x_refs = refs[:M]
    w_ref = refs[M]
    b_ref = refs[M + 1]
    o_ref = refs[M + 2]
    xcat_ref = refs[M + 3] if M > 1 else None

    d_in = sum(widths)
    j = pl.program_id(1)

    if M > 1:
        # Refresh the in-VMEM concat only when the batch tile changes: the x
        # blocks have a constant block index along the inner j axis, so j == 0
        # marks the start of each batch tile's column sweep.  (j is marked
        # "arbitrary" so megacore never splits the sweep across cores.)
        @pl.when(j == 0)
        def _():
            off = 0
            for x_r, d in zip(x_refs, widths):
                xcat_ref[:, off:off + d] = x_r[...].astype(xcat_ref.dtype)
                off += d
        x_all = xcat_ref
    else:
        x_all = x_refs[0]

    # Single full-K matmul: fills the 256-wide MXU contraction on v6e/v7x and
    # lets the MXU do the accumulation instead of (M-1) full-tile VALU adds.
    acc = jnp.dot(x_all[...], w_ref[...], preferred_element_type=jnp.float32)
    acc = acc + b_ref[...].astype(jnp.float32)

    if residual:
        # start_dim == end_dim; the residual is the matching column slice of the
        # already-resident concat (no jnp.concatenate temporary).
        if tn == d_in:
            res = x_all[...]
        else:
            col = j * tn
            if tn % 128 == 0:
                col = pl.multiple_of(col, 128)
            res = x_all[:, pl.ds(col, tn)]
        acc = acc + res.astype(jnp.float32)

    o_ref[...] = acc.astype(o_ref.dtype)


def _xla_forward(comb_tensor, weight, bias, residual, out_dtype):
    x = jnp.concatenate(comb_tensor, axis=1)
    y = jnp.dot(x, weight, preferred_element_type=jnp.float32) + bias.astype(jnp.float32)
    if residual:
        y = x.astype(jnp.float32) + y
    return y.astype(out_dtype)


def _round_up(x, m):
    return (x + m - 1) // m * m


def _vmem_budget():
    """Generation-aware (budget_for_tiles, vmem_limit_bytes)."""
    try:
        cap = pltpu.get_tpu_info().vmem_capacity_bytes
    except Exception:
        cap = 64 * 1024 * 1024  # conservative (v7x-sized) default
    if cap >= 100 * 1024 * 1024:                       # v5e / v6e: 128 MiB physical
        return 48 * 1024 * 1024, 96 * 1024 * 1024
    return 20 * 1024 * 1024, 32 * 1024 * 1024          # v7x: 64 MiB per TensorCore


def _choose_tiles(B, D_in, D_out, in_item, w_item, comp_item, out_item,
                  budget_bytes):
    """Pick (TM, TN) so the pipelined working set fits the VMEM budget."""

    def footprint(tm, tn):
        return (2 * tm * D_in * in_item      # activation tiles (double-buffered)
                + 2 * D_in * tn * w_item     # weight column block (double-buffered)
                + 2 * tn * 4                 # bias (f32)
                + 2 * tm * tn * out_item     # output tile at out dtype
                + tm * D_in * comp_item      # concat scratch (single copy)
                + tm * tn * 4)               # f32 accumulator temporary

    # Batch tile: cap at 512 rows and at ceil(B/2) so the parallel i-axis has at
    # least two steps (megacore sharding on v7x + >=2 pipeline stages everywhere).
    if B < 16:
        tm = B
    else:
        tm = min(512, _round_up(pl.cdiv(B, 2), 8))
        if tm >= B:
            tm = B

    # Output-column tile: prefer the full D_out (weight DMA'd once, fully
    # VMEM-resident); otherwise multiples of 128.
    def tn_options():
        opts = [D_out]
        for t in (4096, 2048, 1024, 512, 256, 128):
            if t < D_out:
                opts.append(t)
        return opts

    def pick_tn(tm_):
        for cand in tn_options():
            if footprint(tm_, cand) <= budget_bytes:
                return cand
        return None

    tn = pick_tn(tm)
    while tn is None and tm > 8:
        tm = max(8, _round_up(tm // 2, 8))
        tn = pick_tn(tm)

    if tn is None:
        return tm, min(128, D_out), False
    return tm, tn, True


def shared_fc_layer(comb_tensor, weight, bias, *, residual=False,
                    compute_dtype=None, min_flops_for_pallas=1 << 22,
                    tile_override=None):
    """Pallas implementation of Shared_FC_Layer.forward.

    comb_tensor:   list/tuple of [B, d_m] arrays (concatenated along axis=1).
    weight:        [D_in, D_out]   (transpose of torch's nn.Linear.weight)
    bias:          [D_out]
    compute_dtype: optional dtype (e.g. jnp.bfloat16) to cast x/weight to; the
                   accumulate, bias add and residual add stay in f32.  Note: with
                   bf16 + residual the residual term is the bf16-rounded x (small
                   documented deviation from the f32 reference).
    tile_override: optional (tm, tn) for testing / manual tuning.
    """
    comb_tensor = list(comb_tensor)
    widths = tuple(int(t.shape[1]) for t in comb_tensor)
    B = int(comb_tensor[0].shape[0])
    D_in = sum(widths)
    D_out = int(weight.shape[1])
    out_dtype = comb_tensor[0].dtype
    assert int(weight.shape[0]) == D_in
    if residual:
        assert D_in == D_out, "residual requires start_dim == end_dim"

    # Size guard: at tiny sizes custom-call / per-grid-step overhead dominates and
    # XLA fusion wins; reserve the Pallas path for real workloads.
    if 2 * B * D_in * D_out < min_flops_for_pallas:
        return _xla_forward(comb_tensor, weight, bias, residual, out_dtype)

    if compute_dtype is not None:
        comb_tensor = [t.astype(compute_dtype) for t in comb_tensor]
        weight = weight.astype(compute_dtype)

    in_item = jnp.dtype(comb_tensor[0].dtype).itemsize
    w_item = jnp.dtype(weight.dtype).itemsize
    out_item = jnp.dtype(out_dtype).itemsize
    comp_item = in_item  # concat scratch dtype == (possibly cast) activation dtype

    budget_bytes, vmem_limit = _vmem_budget()
    if tile_override is not None:
        tm, tn = tile_override
        fits = True
    else:
        tm, tn, fits = _choose_tiles(B, D_in, D_out, in_item, w_item, comp_item,
                                     out_item, budget_bytes)
    if not fits:
        # TODO(synk): K-tiled (D_in-split) accumulator variant for layers whose
        # (tm, D_in) working set alone exceeds VMEM; defer to XLA until then.
        return _xla_forward(comb_tensor, weight, bias, residual, out_dtype)

    bias2d = bias.reshape(1, D_out).astype(jnp.float32)
    M = len(comb_tensor)
    grid = (pl.cdiv(B, tm), pl.cdiv(D_out, tn))

    # Activations: constant block index along the inner j axis -> each x tile is
    # DMA'd once per batch tile and stays VMEM-resident while weight columns sweep.
    in_specs = [pl.BlockSpec((tm, d), lambda i, j: (i, 0)) for d in widths]
    # Full weight, column-tiled only (block index constant when tn == D_out).
    in_specs.append(pl.BlockSpec((D_in, tn), lambda i, j: (0, j)))
    in_specs.append(pl.BlockSpec((1, tn), lambda i, j: (0, j)))

    scratch_shapes = []
    if M > 1:
        scratch_shapes.append(pltpu.VMEM((tm, D_in), comb_tensor[0].dtype))

    kernel = functools.partial(
        _shared_fc_kernel, widths=widths, tn=tn, residual=residual,
        num_modalities=M)

    return pl.pallas_call(
        kernel,
        out_shape=jax.ShapeDtypeStruct((B, D_out), out_dtype),
        grid_spec=pltpu.PrefetchScalarGridSpec(
            num_scalar_prefetch=0,
            grid=grid,
            in_specs=in_specs,
            out_specs=pl.BlockSpec((tm, tn), lambda i, j: (i, j)),
            scratch_shapes=scratch_shapes,
        ),
        compiler_params=pltpu.CompilerParams(
            # i: megacore-parallel over batch tiles; j: "arbitrary" so the
            # concat-scratch refresh ordering (refresh at j == 0) is preserved.
            dimension_semantics=("parallel", "arbitrary"),
            vmem_limit_bytes=vmem_limit,
        ),
    )(*comb_tensor, weight, bias2d)


if __name__ == "__main__":
    key = jax.random.PRNGKey(0)
    k1, k2, k3, k4 = jax.random.split(key, 4)

    # ---- Pallas path: large enough for a real (multi-tile) grid, still quick. ----
    B = 1024
    d1, d2 = 128, 128
    start_dim = d1 + d2          # 256
    end_dim = 512                # non-residual config
    res_dim = start_dim          # residual config (start == end)

    x1 = jax.random.normal(k1, (B, d1), dtype=jnp.float32)
    x2 = jax.random.normal(k2, (B, d2), dtype=jnp.float32)

    bound = 1.0 / (float(start_dim) ** 0.5)
    w_big = jax.random.uniform(k3, (start_dim, end_dim), jnp.float32, -bound, bound)
    b_big = jax.random.uniform(k4, (end_dim,), jnp.float32, -bound, bound)
    w_res = w_big[:, :res_dim]
    b_res = b_big[:res_dim]

    x_cat = jnp.concatenate([x1, x2], axis=1)
    ref = x_cat @ w_big + b_big
    ref_res = x_cat + (x_cat @ w_res + b_res)

    # Non-residual, f32 (weight fully VMEM-resident, grid = (2, 1)).
    out = jax.block_until_ready(shared_fc_layer([x1, x2], w_big, b_big, residual=False))
    assert out.shape == (B, end_dim) and out.dtype == jnp.float32
    assert jnp.allclose(out, ref, atol=2e-2, rtol=2e-2), "non-residual (f32) mismatch"

    # Residual, f32 (residual taken from the concat scratch, full-width block).
    out_res = jax.block_until_ready(
        shared_fc_layer([x1, x2], w_res, b_res, residual=True))
    assert jnp.allclose(out_res, ref_res, atol=2e-2, rtol=2e-2), "residual mismatch"

    # Residual with a forced column-tiled grid (exercises the dynamic column
    # slice of the concat scratch, grid = (2, 2)).
    out_res_tiled = jax.block_until_ready(
        shared_fc_layer([x1, x2], w_res, b_res, residual=True,
                        tile_override=(512, 128)))
    assert jnp.allclose(out_res_tiled, ref_res, atol=2e-2, rtol=2e-2), \
        "column-tiled residual mismatch"

    # Non-residual, bf16 compute / f32 accumulate.
    out_bf16 = jax.block_until_ready(
        shared_fc_layer([x1, x2], w_big, b_big, residual=False,
                        compute_dtype=jnp.bfloat16))
    assert out_bf16.dtype == jnp.float32
    assert jnp.allclose(out_bf16, ref, atol=5e-2, rtol=5e-2), "bf16 mismatch"

    # Three modalities (fused concat of M=3 tiles inside the kernel).
    x3 = jax.random.normal(jax.random.PRNGKey(7), (B, 128), dtype=jnp.float32)
    w3 = jax.random.uniform(jax.random.PRNGKey(8), (384, 256), jnp.float32,
                            -bound, bound)
    b3 = jax.random.uniform(jax.random.PRNGKey(9), (256,), jnp.float32,
                            -bound, bound)
    ref3 = jnp.concatenate([x1, x2, x3], axis=1) @ w3 + b3
    out3 = jax.block_until_ready(
        shared_fc_layer([x1, x2, x3], w3, b3, residual=False))
    assert jnp.allclose(out3, ref3, atol=2e-2, rtol=2e-2), "3-modality mismatch"

    # ---- Tiny problem: exercises the XLA size-guard fallback. ----
    xt1 = x1[:8, :16]
    xt2 = x2[:8, :16]
    wt = w_big[:32, :32]
    bt = b_big[:32]
    out_tiny = jax.block_until_ready(
        shared_fc_layer([xt1, xt2], wt, bt, residual=True))
    xt_cat = jnp.concatenate([xt1, xt2], axis=1)
    ref_tiny = xt_cat + (xt_cat @ wt + bt)
    assert jnp.allclose(out_tiny, ref_tiny, atol=1e-4), "tiny fallback mismatch"

    print("KERNEL_OK")
</pallas_src>

<mosaic_0001>
module attributes {stable_mosaic.version = 11 : i64} {
  func.func @_shared_fc_kernel(%arg0: i32, %arg1: i32, %arg2: memref<512x128xf32, #tpu.memory_space<vmem>>, %arg3: memref<512x128xf32, #tpu.memory_space<vmem>>, %arg4: memref<256x512xf32, #tpu.memory_space<vmem>>, %arg5: memref<1x512xf32, #tpu.memory_space<vmem>>, %arg6: memref<512x512xf32, #tpu.memory_space<vmem>>, %arg7: memref<512x256xf32, #tpu.memory_space<vmem>>) attributes {dimension_semantics = [#tpu.dimension_semantics<parallel>, #tpu.dimension_semantics<arbitrary>], iteration_bounds = array<i64: 2, 1>, scalar_prefetch = 0 : i64, scratch_operands = 1 : i64, tpu.core_type = #tpu.core_type<tc>, window_params = [{transform_indices = @transform_0, window_bounds = array<i64: 512, 128>}, {transform_indices = @transform_1, window_bounds = array<i64: 512, 128>}, {transform_indices = @transform_2, window_bounds = array<i64: 256, 512>}, {transform_indices = @transform_3, window_bounds = array<i64: 1, 512>}, {transform_indices = @transform_4, window_bounds = array<i64: 512, 512>}]} {
    %c0_i32 = arith.constant 0 : i32
    %0 = arith.cmpi eq, %arg1, %c0_i32 : i32
    %1 = arith.extui %0 : i1 to i32
    %c0_i32_0 = arith.constant 0 : i32
    %2 = arith.cmpi ne, %1, %c0_i32_0 : i32
    scf.if %2 {
      %c0_8 = arith.constant 0 : index
      %c0_9 = arith.constant 0 : index
      %10 = vector.load %arg2[%c0_8, %c0_9] : memref<512x128xf32, #tpu.memory_space<vmem>>, vector<512x128xf32>
      %c0_10 = arith.constant 0 : index
      %c0_11 = arith.constant 0 : index
      %11 = vector.load %arg7[%c0_10, %c0_11] : memref<512x256xf32, #tpu.memory_space<vmem>>, vector<512x128xf32>
      tpu.vector_store %arg7[%c0_10, %c0_11], %10 {strides = array<i32>} : memref<512x256xf32, #tpu.memory_space<vmem>>, vector<512x128xf32>,
      %c0_12 = arith.constant 0 : index
      %c0_13 = arith.constant 0 : index
      %12 = vector.load %arg3[%c0_12, %c0_13] : memref<512x128xf32, #tpu.memory_space<vmem>>, vector<512x128xf32>
      %c0_14 = arith.constant 0 : index
      %c128 = arith.constant 128 : index
      %13 = vector.load %arg7[%c0_14, %c128] : memref<512x256xf32, #tpu.memory_space<vmem>>, vector<512x128xf32>
      tpu.vector_store %arg7[%c0_14, %c128], %12 {strides = array<i32>} : memref<512x256xf32, #tpu.memory_space<vmem>>, vector<512x128xf32>,
    } else {
    }
    %c0 = arith.constant 0 : index
    %c0_1 = arith.constant 0 : index
    %3 = vector.load %arg7[%c0, %c0_1] : memref<512x256xf32, #tpu.memory_space<vmem>>, vector<512x256xf32>
    %c0_2 = arith.constant 0 : index
    %c0_3 = arith.constant 0 : index
    %4 = vector.load %arg4[%c0_2, %c0_3] : memref<256x512xf32, #tpu.memory_space<vmem>>, vector<256x512xf32>
    %cst = arith.constant dense<0.000000e+00> : vector<512x512xf32>
    %5 = tpu.matmul %3, %4, %cst {dimension_numbers = #tpu.dot_dimension_numbers<[1], [0], [0], [1], [0, 0, 1, 1], [], []>} : vector<512x256xf32>, vector<256x512xf32>, vector<512x512xf32> -> vector<512x512xf32>
    %c0_4 = arith.constant 0 : index
    %c0_5 = arith.constant 0 : index
    %6 = vector.load %arg5[%c0_4, %c0_5] : memref<1x512xf32, #tpu.memory_space<vmem>>, vector<1x512xf32>
    %7 = vector.broadcast %6 : vector<1x512xf32> to vector<512x512xf32>
    %8 = arith.addf %5, %7 : vector<512x512xf32>
    %c0_6 = arith.constant 0 : index
    %c0_7 = arith.constant 0 : index
    %9 = vector.load %arg6[%c0_6, %c0_7] : memref<512x512xf32, #tpu.memory_space<vmem>>, vector<512x512xf32>
    tpu.vector_store %arg6[%c0_6, %c0_7], %8 {strides = array<i32>} : memref<512x512xf32, #tpu.memory_space<vmem>>, vector<512x512xf32>,
    return
  }
  func.func @transform_0(%arg0: i32, %arg1: i32) -> (i32, i32) {
    %c0_i32 = arith.constant 0 : i32
    %c0_i32_0 = arith.constant 0 : i32
    return %arg0, %c0_i32 : i32, i32
  }
  func.func @transform_1(%arg0: i32, %arg1: i32) -> (i32, i32) {
    %c0_i32 = arith.constant 0 : i32
    %c0_i32_0 = arith.constant 0 : i32
    return %arg0, %c0_i32 : i32, i32
  }
  func.func @transform_2(%arg0: i32, %arg1: i32) -> (i32, i32) {
    %c0_i32 = arith.constant 0 : i32
    %c0_i32_0 = arith.constant 0 : i32
    return %c0_i32, %arg1 : i32, i32
  }
  func.func @transform_3(%arg0: i32, %arg1: i32) -> (i32, i32) {
    %c0_i32 = arith.constant 0 : i32
    %c0_i32_0 = arith.constant 0 : i32
    return %c0_i32, %arg1 : i32, i32
  }
  func.func @transform_4(%arg0: i32, %arg1: i32) -> (i32, i32) {
    %c0_i32 = arith.constant 0 : i32
    return %arg0, %arg1 : i32, i32
  }
}

</mosaic_0001>

<llo_original>
// kernel: tpu_custom_call.1
$region0: #{tpu_custom_call.1}
  #allocation0 [shape = 'u32[]', space=smem, size = 0x4, offset = 0x4, fixed_abs, tag = 'smem constant byte address 0x4 - core index']
  #allocation1 [shape = 'u32[144,128]{1,0:T(1,128)}', space=vmem, size = 0x12000, scoped, tag = 'internal scratch']
  #allocation2 [shape = 'f32[512,256]{1,0:T(8,128)}', space=vmem, size = 0x80000, scoped, tag = 'scratch operand']
  %s0 = inlined_call_operand.hbm [shape: f32[1024,128], index: 0, kind: input, shape index: {}]
  %s1 = inlined_call_operand.hbm [shape: f32[1024,128], index: 1, kind: input, shape index: {}]
  %s2 = inlined_call_operand.hbm [shape: f32[256,512], index: 2, kind: input, shape index: {}]
  %s3 = inlined_call_operand.hbm [shape: f32[1,512], index: 3, kind: input, shape index: {}]
  %s4 = inlined_call_operand.hbm [shape: f32[1024,512], index: 4, kind: output, shape index: {}]
  %s5 = sld [smem:[#allocation0]]
  $region69: #{tpu_custom_call.1} parent=0
    _
  %s7 = ssub.s32 1, %s5
  %s8 = scalar_select 0, %s7, %s5
  $region1: #{tpu_custom_call.1} parent=0
    #allocation3 [shape = 'u8[524288]{0}', space=vmem, size = 0x80000, scoped, tag = 'input window, operand 0']
    #allocation4 [shape = 's32[2]{0}', space=sflag, size = 0x8, scoped, tag = 'scoped memory for tpu_custom_call.1']
    #allocation5 [shape = 's32[2]{0}', space=sflag, size = 0x8, scoped, tag = 'scoped memory for tpu_custom_call.1']
    #allocation6 [shape = 'u8[524288]{0}', space=vmem, size = 0x80000, scoped, tag = 'input window, operand 1']
    #allocation7 [shape = 's32[2]{0}', space=sflag, size = 0x8, scoped, tag = 'scoped memory for tpu_custom_call.1']
    #allocation8 [shape = 'u8[524288]{0}', space=vmem, size = 0x80000, scoped, tag = 'input window, operand 2, single buffered']
    #allocation9 [shape = 'u8[2048]{0}', space=vmem, size = 0x800, scoped, tag = 'input window, operand 3, single buffered']
    #allocation10 [shape = 's32[1]{0}', space=sflag, size = 0x4, scoped, tag = 'scoped memory for tpu_custom_call.1']
    #allocation11 [shape = 'u8[2097152]{0}', space=vmem, size = 0x200000, scoped, tag = 'output window, operand 0']
    %9 = vsyncpa [#allocation4], 0
    %s10 = scalar_lea.sflag [#allocation4], 1
    %11 = vsyncpa %s10, 0
    %12 = vsyncpa [#allocation7], 0
    %s13 = scalar_lea.sflag [#allocation7], 1
    %14 = vsyncpa %s13, 0
    %15 = vsyncpa [#allocation10], 0
    %16 = vsyncpa [#allocation5], 0
    %s17 = scalar_lea.sflag [#allocation5], 1
    %18 = vsyncpa %s17, 0
    loop: start=0, step=1, limit=4
    $region2: #{tpu_custom_call.1} parent=1 // loop_pre_header
      _
    $region3: #{tpu_custom_call.1} parent=1 // loop_header
      %s20 = sphi 0, %s24
      %p21 = scmp.ge.s32.totalorder %s20, 4
      %s27 = sphi 0, %s39
      %s28 = sphi 0, %s35
      %s29 = sphi 0, %s27
      %s30 = sphi 0, %s28
      %s31 = sphi 0, %s29
      %s32 = sphi 0, %s30
      %s42 = sphi 0, %s44
      %s45 = sphi 0, %s42
      %s46 = sphi 0, %s45
      %s62 = sphi 0, %s46
      %s68 = sphi 0, %s70
      %s71 = sphi 0, %s68
      %s72 = sphi 0, %s71
      %s88 = sphi 0, %s72
      %s94 = sphi 0, %s96
      %s97 = sphi 0, %s94
      %s98 = sphi 0, %s97
      %s114 = sphi 0, %s98
      %s120 = sphi 0, %s122
      %s123 = sphi 0, %s120
      %s124 = sphi 0, %s123
      %s140 = sphi 0, %s124
      %s148 = sphi 0, %s150
      %s151 = sphi 0, %s148
      %s152 = sphi 0, %s151
      %s168 = sphi 0, %s152
    $region4: #{tpu_custom_call.1} parent=1 // loop_header_branch
      %23 = sbr.rel (%p21) target = $region8
    $region5: #{tpu_custom_call.1} parent=1 // loop_body
      %s25 = ssub.s32 %s20, 1
      %s26 = ssub.s32 %s20, 2
      %s33 = sadd.s32 1, %s28
      %p34 = scmp.ge.s32.totalorder %s33, 1
      %s35 = scalar_select %p34, 0, %s33
      %s36 = sadd.s32 1, %s27
      %s37 = scalar_select %p34, %s36, %s27
      %p38 = scmp.ge.s32.totalorder %s37, 2
      %s39 = scalar_select %p38, 0, %s37
      %s40 = ssub.s32 %s27, %s39
      %p41 = scmp.eq.s32.totalorder %s40, 0
      %s43 = sadd.s32 %s42, 1
      %s44 = scalar_select %p41, %s42, %s43
      %p47 = pneg %p41
      %p48 = scmp.eq.s32.totalorder %s20, 1
      %p49 = por %p47, %p48
      %p50 = scmp.ne.s32.totalorder %s42, %s45
      %p51 = scmp.eq.s32.totalorder %s20, 0
      %p52 = por %p50, %p51
      %p53 = scmp.ne.s32.totalorder %s42, %s45
      %p54 = scmp.eq.s32.totalorder %s25, 1
      %p55 = por %p53, %p54
      %p56 = scmp.ne.s32.totalorder %s45, %s46
      %p57 = scmp.eq.s32.totalorder %s25, 0
      %p58 = por %p56, %p57
      %p59 = scmp.ne.s32.totalorder %s45, %s46
      %p60 = scmp.eq.s32.totalorder %s26, 1
      %p61 = por %p59, %p60
      %p63 = scmp.ne.s32.totalorder %s46, %s62
      %p64 = scmp.eq.s32.totalorder %s26, 0
      %p65 = por %p63, %p64
      %s66 = ssub.s32 %s27, %s39
      %p67 = scmp.eq.s32.totalorder %s66, 0
      %s69 = sadd.s32 %s68, 1
      %s70 = scalar_select %p67, %s68, %s69
      %p73 = pneg %p67
      %p74 = scmp.eq.s32.totalorder %s20, 1
      %p75 = por %p73, %p74
      %p76 = scmp.ne.s32.totalorder %s68, %s71
      %p77 = scmp.eq.s32.totalorder %s20, 0
      %p78 = por %p76, %p77
      %p79 = scmp.ne.s32.totalorder %s68, %s71
      %p80 = scmp.eq.s32.totalorder %s25, 1
      %p81 = por %p79, %p80
      %p82 = scmp.ne.s32.totalorder %s71, %s72
      %p83 = scmp.eq.s32.totalorder %s25, 0
      %p84 = por %p82, %p83
      %p85 = scmp.ne.s32.totalorder %s71, %s72
      %p86 = scmp.eq.s32.totalorder %s26, 1
      %p87 = por %p85, %p86
      %p89 = scmp.ne.s32.totalorder %s72, %s88
      %p90 = scmp.eq.s32.totalorder %s26, 0
      %p91 = por %p89, %p90
      %s92 = ssub.s32 %s28, %s35
      %p93 = scmp.eq.s32.totalorder %s92, 0
      %s95 = sadd.s32 %s94, 1
      %s96 = scalar_select %p93, %s94, %s95
      %p99 = pneg %p93
      %p100 = scmp.eq.s32.totalorder %s20, 1
      %p101 = por %p99, %p100
      %p102 = scmp.ne.s32.totalorder %s94, %s97
      %p103 = scmp.eq.s32.totalorder %s20, 0
      %p104 = por %p102, %p103
      %p105 = scmp.ne.s32.totalorder %s94, %s97
      %p106 = scmp.eq.s32.totalorder %s25, 1
      %p107 = por %p105, %p106
      %p108 = scmp.ne.s32.totalorder %s97, %s98
      %p109 = scmp.eq.s32.totalorder %s25, 0
      %p110 = por %p108, %p109
      %p111 = scmp.ne.s32.totalorder %s97, %s98
      %p112 = scmp.eq.s32.totalorder %s26, 1
      %p113 = por %p111, %p112
      %p115 = scmp.ne.s32.totalorder %s98, %s114
      %p116 = scmp.eq.s32.totalorder %s26, 0
      %p117 = por %p115, %p116
      %s118 = ssub.s32 %s28, %s35
      %p119 = scmp.eq.s32.totalorder %s118, 0
      %s121 = sadd.s32 %s120, 1
      %s122 = scalar_select %p119, %s120, %s121
      %p125 = pneg %p119
      %p126 = scmp.eq.s32.totalorder %s20, 1
      %p127 = por %p125, %p126
      %p128 = scmp.ne.s32.totalorder %s120, %s123
      %p129 = scmp.eq.s32.totalorder %s20, 0
      %p130 = por %p128, %p129
      %p131 = scmp.ne.s32.totalorder %s120, %s123
      %p132 = scmp.eq.s32.totalorder %s25, 1
      %p133 = por %p131, %p132
      %p134 = scmp.ne.s32.totalorder %s123, %s124
      %p135 = scmp.eq.s32.totalorder %s25, 0
      %p136 = por %p134, %p135
      %p137 = scmp.ne.s32.totalorder %s123, %s124
      %p138 = scmp.eq.s32.totalorder %s26, 1
      %p139 = por %p137, %p138
      %p141 = scmp.ne.s32.totalorder %s124, %s140
      %p142 = scmp.eq.s32.totalorder %s26, 0
      %p143 = por %p141, %p142
      %s144 = ssub.s32 %s27, %s39
      %s145 = ssub.s32 %s28, %s35
      %s146 = sor.u32 %s144, %s145
      %p147 = scmp.eq.s32.totalorder %s146, 0
      %s149 = sadd.s32 %s148, 1
      %s150 = scalar_select %p147, %s148, %s149
      %p153 = pneg %p147
      %p154 = scmp.eq.s32.totalorder %s20, 1
      %p155 = por %p153, %p154
      %p156 = scmp.ne.s32.totalorder %s148, %s151
      %p157 = scmp.eq.s32.totalorder %s20, 0
      %p158 = por %p156, %p157
      %p159 = scmp.ne.s32.totalorder %s148, %s151
      %p160 = scmp.eq.s32.totalorder %s25, 1
      %p161 = por %p159, %p160
      %p162 = scmp.ne.s32.totalorder %s151, %s152
      %p163 = scmp.eq.s32.totalorder %s25, 0
      %p164 = por %p162, %p163
      %p165 = scmp.ne.s32.totalorder %s151, %s152
      %p166 = scmp.eq.s32.totalorder %s26, 1
      %p167 = por %p165, %p166
      %p169 = scmp.ne.s32.totalorder %s152, %s168
      %p170 = scmp.eq.s32.totalorder %s26, 0
      %p171 = por %p169, %p170
      %p172 = scmp.le.s32.totalorder 1, %s20
      %p173 = scmp.lt.s32.totalorder %s20, 3
      %p174 = pnand %p172, %p173
      %p175 = pneg %p174
      // Predicated region
      $region9: #{tpu_custom_call.1} parent=5 // pred_check
        _
      $region10: #{tpu_custom_call.1} parent=5 // pred_check_branch
        %177 = sbr.rel (%p174) target = $region12
      $region11: #{tpu_custom_call.1} parent=5 // pred_region
        %s178 = ssub.s32 %s20, 1
        // Predicated region
        $region13: #{tpu_custom_call.1} parent=11 // pred_check
          %p179 = pneg %p110
        $region14: #{tpu_custom_call.1} parent=11 // pred_check_branch
          %181 = sbr.rel (%p179) target = $region16
        $region15: #{tpu_custom_call.1} parent=11 // pred_region
          %s182 = smul.u32 4, %s30
          %s184 = ssub.s32 16384, 16384
          %185 = vsyncadd [#allocation7], %s184
          %s186 = smul.addr %s182, 128
          %s187 = scalar_lea.hbm %s2, %s186
          %s188 = sshll.u32 [#allocation8], 4
          %s189 = int_to_ptr.vmem [resolvable:$true] %s188
          %194 = dma.hbm_to_vmem [thread:$0]  %s187, 16384, %s189, [#allocation7], 512, 512, 32
        $region16: #{tpu_custom_call.1} parent=11 // pred_fallthru
          _
        // Predicated region
        $region17: #{tpu_custom_call.1} parent=11 // pred_check
          %p195 = pneg %p136
        $region18: #{tpu_custom_call.1} parent=11 // pred_check_branch
          %197 = sbr.rel (%p195) target = $region20
        $region19: #{tpu_custom_call.1} parent=11 // pred_region
          %s198 = smul.u32 4, %s30
          %s200 = ssub.s32 64, 64
          %201 = vsyncadd [#allocation10], %s200
          %s202 = smul.addr %s198, 16
          %s203 = scalar_lea.hbm %s3, %s202
          %s205 = sshll.u32 [#allocation9], 4
          %s206 = int_to_ptr.vmem [resolvable:$true] %s205
          %208 = dma.hbm_to_vmem [thread:$0]  %s203, 64, %s206, [#allocation10]
        $region20: #{tpu_custom_call.1} parent=11 // pred_fallthru
          _
      $region12: #{tpu_custom_call.1} parent=5 // pred_fallthru
        _
      %p209 = scmp.lt.s32.totalorder %s20, 2
      // Predicated region
      $region21: #{tpu_custom_call.1} parent=5 // pred_check
        %p210 = pneg %p209
      $region22: #{tpu_custom_call.1} parent=5 // pred_check_branch
        %212 = sbr.rel (%p210) target = $region24
      $region23: #{tpu_custom_call.1} parent=5 // pred_region
        // Predicated region
        $region25: #{tpu_custom_call.1} parent=23 // pred_check
          %p213 = pneg %p52
        $region26: #{tpu_custom_call.1} parent=23 // pred_check_branch
          %215 = sbr.rel (%p213) target = $region28
        $region27: #{tpu_custom_call.1} parent=23 // pred_region
          %s216 = sand.u32 %s42, 1
          %s217 = scalar_lea.sflag [#allocation4], %s216
          %s218 = sand.u32 %s42, 1
          %s219 = smul.addr %s218, 512
          %s220 = scalar_lea.vmem [#allocation3], %s219
          %s221 = smul.u32 64, %s27
          %s223 = ssub.s32 8192, 8192
          %224 = vsyncadd %s217, %s223
          %s225 = smul.addr %s221, 128
          %s226 = scalar_lea.hbm %s0, %s225
          %s227 = sshll.u32 %s220, 4
          %s228 = int_to_ptr.vmem [resolvable:$true] %s227
          %233 = dma.hbm_to_vmem [thread:$0]  %s226, 8192, %s228, %s217, 128, 128, 8
        $region28: #{tpu_custom_call.1} parent=23 // pred_fallthru
          _
        // Predicated region
        $region29: #{tpu_custom_call.1} parent=23 // pred_check
          %p234 = pneg %p78
        $region30: #{tpu_custom_call.1} parent=23 // pred_check_branch
          %236 = sbr.rel (%p234) target = $region32
        $region31: #{tpu_custom_call.1} parent=23 // pred_region
          %s237 = sand.u32 %s20, 1
          %s238 = scalar_lea.sflag [#allocation7], %s237
          %s239 = sand.u32 %s68, 1
          %s240 = smul.addr %s239, 512
          %s241 = scalar_lea.vmem [#allocation6], %s240
          %s242 = smul.u32 64, %s27
          %s244 = ssub.s32 8192, 8192
          %245 = vsyncadd %s238, %s244
          %s246 = smul.addr %s242, 128
          %s247 = scalar_lea.hbm %s1, %s246
          %s248 = sshll.u32 %s241, 4
          %s249 = int_to_ptr.vmem [resolvable:$true] %s248
          %254 = dma.hbm_to_vmem [thread:$0]  %s247, 8192, %s249, %s238, 128, 128, 8
        $region32: #{tpu_custom_call.1} parent=23 // pred_fallthru
          _
      $region24: #{tpu_custom_call.1} parent=5 // pred_fallthru
        _
      %p255 = scmp.le.s32.totalorder 1, %s20
      %p256 = scmp.lt.s32.totalorder %s20, 3
      %p257 = pnand %p255, %p256
      %p258 = pneg %p257
      // Predicated region
      $region33: #{tpu_custom_call.1} parent=5 // pred_check
        _
      $region34: #{tpu_custom_call.1} parent=5 // pred_check_branch
        %260 = sbr.rel (%p257) target = $region36
      $region35: #{tpu_custom_call.1} parent=5 // pred_region
        %s261 = ssub.s32 %s20, 1
        %s262 = sand.u32 %s45, 1
        %s263 = scalar_lea.sflag [#allocation4], %s262
        %s264 = sand.u32 %s45, 1
        %s265 = smul.addr %s264, 512
        %s266 = scalar_lea.vmem [#allocation3], %s265
        // Predicated region
        $region37: #{tpu_custom_call.1} parent=35 // pred_check
          %p267 = pneg %p58
        $region38: #{tpu_custom_call.1} parent=35 // pred_check_branch
          %269 = sbr.rel (%p267) target = $region40
        $region39: #{tpu_custom_call.1} parent=35 // pred_region
          %270 = dma.done %s263, 8192
        $region40: #{tpu_custom_call.1} parent=35 // pred_fallthru
          _
        %s271 = sand.u32 %s25, 1
        %s272 = scalar_lea.sflag [#allocation7], %s271
        %s273 = sand.u32 %s71, 1
        %s274 = smul.addr %s273, 512
        %s275 = scalar_lea.vmem [#allocation6], %s274
        // Predicated region
        $region41: #{tpu_custom_call.1} parent=35 // pred_check
          %p276 = pneg %p84
        $region42: #{tpu_custom_call.1} parent=35 // pred_check_branch
          %278 = sbr.rel (%p276) target = $region44
        $region43: #{tpu_custom_call.1} parent=35 // pred_region
          %279 = dma.done %s272, 8192
        $region44: #{tpu_custom_call.1} parent=35 // pred_fallthru
          _
        // Predicated region
        $region45: #{tpu_custom_call.1} parent=35 // pred_check
          %p280 = pneg %p110
        $region46: #{tpu_custom_call.1} parent=35 // pred_check_branch
          %282 = sbr.rel (%p280) target = $region48
        $region47: #{tpu_custom_call.1} parent=35 // pred_region
          %283 = dma.done [#allocation7], 16384
        $region48: #{tpu_custom_call.1} parent=35 // pred_fallthru
          _
        // Predicated region
        $region49: #{tpu_custom_call.1} parent=35 // pred_check
          %p284 = pneg %p136
        $region50: #{tpu_custom_call.1} parent=35 // pred_check_branch
          %286 = sbr.rel (%p284) target = $region52
        $region51: #{tpu_custom_call.1} parent=35 // pred_region
          %287 = dma.done [#allocation10], 64
        $region52: #{tpu_custom_call.1} parent=35 // pred_fallthru
          _
        %s288 = sand.u32 %s45, 1
        %s289 = scalar_lea.sflag [#allocation4], %s288
        %s290 = sand.u32 %s45, 1
        %s291 = smul.addr %s290, 512
        %s292 = scalar_lea.vmem [#allocation3], %s291
        %p293 = pneg %p58
        %p294 = pneg %p55
        %s295 = sand.u32 %s25, 1
        %s296 = scalar_lea.sflag [#allocation7], %s295
        %s297 = sand.u32 %s71, 1
        %s298 = smul.addr %s297, 512
        %s299 = scalar_lea.vmem [#allocation6], %s298
        %p300 = pneg %p84
        %p301 = pneg %p81
        %p302 = pneg %p110
        %p303 = pneg %p107
        %p304 = pneg %p136
        %p305 = pneg %p133
        %p306 = pneg %p164
        %p307 = pneg %p161
        %s308 = sand.u32 %s151, 1
        %s309 = scalar_lea.sflag [#allocation5], %s308
        %s310 = sand.u32 %s151, 1
        %s311 = smul.addr %s310, 2048
        %s312 = scalar_lea.vmem [#allocation11], %s311
        %s313 = smul.u32 64, %s29
        %s314 = smul.u32 64, %s29
        %s315 = smul.u32 4, %s30
        %s316 = smul.u32 4, %s30
        %s317 = smul.u32 64, %s29
        %s318 = smul.u32 4, %s30
        %p319 = scmp.eq.s32.totalorder %s30, 0
        // Predicated region
        $region53: #{tpu_custom_call.1} parent=35 // pred_check
          %p320 = pneg %p319
        $region54: #{tpu_custom_call.1} parent=35 // pred_check_branch
          %322 = sbr.rel (%p320) target = $region56
        $region55: #{tpu_custom_call.1} parent=35 // pred_region
          %v323 = vld [vmem:[%s266] sm:$0xff]
          %v324 = vld [vmem:[%s266 + $0x8] sm:$0xff]
          %v325 = vld [vmem:[%s266 + $0x10] sm:$0xff]
          %v326 = vld [vmem:[%s266 + $0x18] sm:$0xff]
          %v327 = vld [vmem:[%s266 + $0x20] sm:$0xff]
          %v328 = vld [vmem:[%s266 + $0x28] sm:$0xff]
          %v329 = vld [vmem:[%s266 + $0x30] sm:$0xff]
          %v330 = vld [vmem:[%s266 + $0x38] sm:$0xff]
          %v331 = vld [vmem:[%s266 + $0x40] sm:$0xff]
          %v332 = vld [vmem:[%s266 + $0x48] sm:$0xff]
          %v333 = vld [vmem:[%s266 + $0x50] sm:$0xff]
          %v334 = vld [vmem:[%s266 + $0x58] sm:$0xff]
          %v335 = vld [vmem:[%s266 + $0x60] sm:$0xff]
          %v336 = vld [vmem:[%s266 + $0x68] sm:$0xff]
          %v337 = vld [vmem:[%s266 + $0x70] sm:$0xff]
          %v338 = vld [vmem:[%s266 + $0x78] sm:$0xff]
          %v339 = vld [vmem:[%s266 + $0x80] sm:$0xff]
          %v340 = vld [vmem:[%s266 + $0x88] sm:$0xff]
          %v341 = vld [vmem:[%s266 + $0x90] sm:$0xff]
          %v342 = vld [vmem:[%s266 + $0x98] sm:$0xff]
          %v343 = vld [vmem:[%s266 + $0xa0] sm:$0xff]
          %v344 = vld [vmem:[%s266 + $0xa8] sm:$0xff]
          %v345 = vld [vmem:[%s266 + $0xb0] sm:$0xff]
          %v346 = vld [vmem:[%s266 + $0xb8] sm:$0xff]
          %v347 = vld [vmem:[%s266 + $0xc0] sm:$0xff]
          %v348 = vld [vmem:[%s266 + $0xc8] sm:$0xff]
          %v349 = vld [vmem:[%s266 + $0xd0] sm:$0xff]
          %v350 = vld [vmem:[%s266 + $0xd8] sm:$0xff]
          %v351 = vld [vmem:[%s266 + $0xe0] sm:$0xff]
          %v352 = vld [vmem:[%s266 + $0xe8] sm:$0xff]
          %v353 = vld [vmem:[%s266 + $0xf0] sm:$0xff]
          %v354 = vld [vmem:[%s266 + $0xf8] sm:$0xff]
          %v355 = vld [vmem:[%s266 + $0x100] sm:$0xff]
          %v356 = vld [vmem:[%s266 + $0x108] sm:$0xff]
          %v357 = vld [vmem:[%s266 + $0x110] sm:$0xff]
          %v358 = vld [vmem:[%s266 + $0x118] sm:$0xff]
          %v359 = vld [vmem:[%s266 + $0x120] sm:$0xff]
          %v360 = vld [vmem:[%s266 + $0x128] sm:$0xff]
          %v361 = vld [vmem:[%s266 + $0x130] sm:$0xff]
          %v362 = vld [vmem:[%s266 + $0x138] sm:$0xff]
          %v363 = vld [vmem:[%s266 + $0x140] sm:$0xff]
          %v364 = vld [vmem:[%s266 + $0x148] sm:$0xff]
          %v365 = vld [vmem:[%s266 + $0x150] sm:$0xff]
          %v366 = vld [vmem:[%s266 + $0x158] sm:$0xff]
          %v367 = vld [vmem:[%s266 + $0x160] sm:$0xff]
          %v368 = vld [vmem:[%s266 + $0x168] sm:$0xff]
          %v369 = vld [vmem:[%s266 + $0x170] sm:$0xff]
          %v370 = vld [vmem:[%s266 + $0x178] sm:$0xff]
          %v371 = vld [vmem:[%s266 + $0x180] sm:$0xff]
          %v372 = vld [vmem:[%s266 + $0x188] sm:$0xff]
          %v373 = vld [vmem:[%s266 + $0x190] sm:$0xff]
          %v374 = vld [vmem:[%s266 + $0x198] sm:$0xff]
          %v375 = vld [vmem:[%s266 + $0x1a0] sm:$0xff]
          %v376 = vld [vmem:[%s266 + $0x1a8] sm:$0xff]
          %v377 = vld [vmem:[%s266 + $0x1b0] sm:$0xff]
          %v378 = vld [vmem:[%s266 + $0x1b8] sm:$0xff]
          %v379 = vld [vmem:[%s266 + $0x1c0] sm:$0xff]
          %v380 = vld [vmem:[%s266 + $0x1c8] sm:$0xff]
          %v381 = vld [vmem:[%s266 + $0x1d0] sm:$0xff]
          %v382 = vld [vmem:[%s266 + $0x1d8] sm:$0xff]
          %v383 = vld [vmem:[%s266 + $0x1e0] sm:$0xff]
          %v384 = vld [vmem:[%s266 + $0x1e8] sm:$0xff]
          %v385 = vld [vmem:[%s266 + $0x1f0] sm:$0xff]
          %v386 = vld [vmem:[%s266 + $0x1f8] sm:$0xff]
          %387 = vst [vmem:[#allocation2] sm:$0xff] %v323
          %388 = vst [vmem:[#allocation2 + $0x10] sm:$0xff] %v324
          %389 = vst [vmem:[#allocation2 + $0x20] sm:$0xff] %v325
          %390 = vst [vmem:[#allocation2 + $0x30] sm:$0xff] %v326
          %391 = vst [vmem:[#allocation2 + $0x40] sm:$0xff] %v327
          %392 = vst [vmem:[#allocation2 + $0x50] sm:$0xff] %v328
          %393 = vst [vmem:[#allocation2 + $0x60] sm:$0xff] %v329
          %394 = vst [vmem:[#allocation2 + $0x70] sm:$0xff] %v330
          %395 = vst [vmem:[#allocation2 + $0x80] sm:$0xff] %v331
          %396 = vst [vmem:[#allocation2 + $0x90] sm:$0xff] %v332
          %397 = vst [vmem:[#allocation2 + $0xa0] sm:$0xff] %v333
          %398 = vst [vmem:[#allocation2 + $0xb0] sm:$0xff] %v334
          %399 = vst [vmem:[#allocation2 + $0xc0] sm:$0xff] %v335
          %400 = vst [vmem:[#allocation2 + $0xd0] sm:$0xff] %v336
          %401 = vst [vmem:[#allocation2 + $0xe0] sm:$0xff] %v337
          %402 = vst [vmem:[#allocation2 + $0xf0] sm:$0xff] %v338
          %403 = vst [vmem:[#allocation2 + $0x100] sm:$0xff] %v339
          %404 = vst [vmem:[#allocation2 + $0x110] sm:$0xff] %v340
          %405 = vst [vmem:[#allocation2 + $0x120] sm:$0xff] %v341
          %406 = vst [vmem:[#allocation2 + $0x130] sm:$0xff] %v342
          %407 = vst [vmem:[#allocation2 + $0x140] sm:$0xff] %v343
          %408 = vst [vmem:[#allocation2 + $0x150] sm:$0xff] %v344
          %409 = vst [vmem:[#allocation2 + $0x160] sm:$0xff] %v345
          %410 = vst [vmem:[#allocation2 + $0x170] sm:$0xff] %v346
          %411 = vst [vmem:[#allocation2 + $0x180] sm:$0xff] %v347
          %412 = vst [vmem:[#allocation2 + $0x190] sm:$0xff] %v348
          %413 = vst [vmem:[#allocation2 + $0x1a0] sm:$0xff] %v349
          %414 = vst [vmem:[#allocation2 + $0x1b0] sm:$0xff] %v350
          %415 = vst [vmem:[#allocation2 + $0x1c0] sm:$0xff] %v351
          %416 = vst [vmem:[#allocation2 + $0x1d0] sm:$0xff] %v352
          %417 = vst [vmem:[#allocation2 + $0x1e0] sm:$0xff] %v353
          %418 = vst [vmem:[#allocation2 + $0x1f0] sm:$0xff] %v354
          %419 = vst [vmem:[#allocation2 + $0x200] sm:$0xff] %v355
          %420 = vst [vmem:[#allocation2 + $0x210] sm:$0xff] %v356
          %421 = vst [vmem:[#allocation2 + $0x220] sm:$0xff] %v357
          %422 = vst [vmem:[#allocation2 + $0x230] sm:$0xff] %v358
          %423 = vst [vmem:[#allocation2 + $0x240] sm:$0xff] %v359
          %424 = vst [vmem:[#allocation2 + $0x250] sm:$0xff] %v360
          %425 = vst [vmem:[#allocation2 + $0x260] sm:$0xff] %v361
          %426 = vst [vmem:[#allocation2 + $0x270] sm:$0xff] %v362
          %427 = vst [vmem:[#allocation2 + $0x280] sm:$0xff] %v363
          %428 = vst [vmem:[#allocation2 + $0x290] sm:$0xff] %v364
          %429 = vst [vmem:[#allocation2 + $0x2a0] sm:$0xff] %v365
          %430 = vst [vmem:[#allocation2 + $0x2b0] sm:$0xff] %v366
          %431 = vst [vmem:[#allocation2 + $0x2c0] sm:$0xff] %v367
          %432 = vst [vmem:[#allocation2 + $0x2d0] sm:$0xff] %v368
          %433 = vst [vmem:[#allocation2 + $0x2e0] sm:$0xff] %v369
          %434 = vst [vmem:[#allocation2 + $0x2f0] sm:$0xff] %v370
          %435 = vst [vmem:[#allocation2 + $0x300] sm:$0xff] %v371
          %436 = vst [vmem:[#allocation2 + $0x310] sm:$0xff] %v372
          %437 = vst [vmem:[#allocation2 + $0x320] sm:$0xff] %v373
          %438 = vst [vmem:[#allocation2 + $0x330] sm:$0xff] %v374
          %439 = vst [vmem:[#allocation2 + $0x340] sm:$0xff] %v375
          %440 = vst [vmem:[#allocation2 + $0x350] sm:$0xff] %v376
          %441 = vst [vmem:[#allocation2 + $0x360] sm:$0xff] %v377
          %442 = vst [vmem:[#allocation2 + $0x370] sm:$0xff] %v378
          %443 = vst [vmem:[#allocation2 + $0x380] sm:$0xff] %v379
          %444 = vst [vmem:[#allocation2 + $0x390] sm:$0xff] %v380
          %445 = vst [vmem:[#allocation2 + $0x3a0] sm:$0xff] %v381
          %446 = vst [vmem:[#allocation2 + $0x3b0] sm:$0xff] %v382
          %447 = vst [vmem:[#allocation2 + $0x3c0] sm:$0xff] %v383
          %448 = vst [vmem:[#allocation2 + $0x3d0] sm:$0xff] %v384
          %449 = vst [vmem:[#allocation2 + $0x3e0] sm:$0xff] %v385
          %450 = vst [vmem:[#allocation2 + $0x3f0] sm:$0xff] %v386
          %v451 = vld [vmem:[%s275] sm:$0xff]
          %v452 = vld [vmem:[%s275 + $0x8] sm:$0xff]
          %v453 = vld [vmem:[%s275 + $0x10] sm:$0xff]
          %v454 = vld [vmem:[%s275 + $0x18] sm:$0xff]
          %v455 = vld [vmem:[%s275 + $0x20] sm:$0xff]
          %v456 = vld [vmem:[%s275 + $0x28] sm:$0xff]
          %v457 = vld [vmem:[%s275 + $0x30] sm:$0xff]
          %v458 = vld [vmem:[%s275 + $0x38] sm:$0xff]
          %v459 = vld [vmem:[%s275 + $0x40] sm:$0xff]
          %v460 = vld [vmem:[%s275 + $0x48] sm:$0xff]
          %v461 = vld [vmem:[%s275 + $0x50] sm:$0xff]
          %v462 = vld [vmem:[%s275 + $0x58] sm:$0xff]
          %v463 = vld [vmem:[%s275 + $0x60] sm:$0xff]
          %v464 = vld [vmem:[%s275 + $0x68] sm:$0xff]
          %v465 = vld [vmem:[%s275 + $0x70] sm:$0xff]
          %v466 = vld [vmem:[%s275 + $0x78] sm:$0xff]
          %v467 = vld [vmem:[%s275 + $0x80] sm:$0xff]
          %v468 = vld [vmem:[%s275 + $0x88] sm:$0xff]
          %v469 = vld [vmem:[%s275 + $0x90] sm:$0xff]
          %v470 = vld [vmem:[%s275 + $0x98] sm:$0xff]
          %v471 = vld [vmem:[%s275 + $0xa0] sm:$0xff]
          %v472 = vld [vmem:[%s275 + $0xa8] sm:$0xff]
          %v473 = vld [vmem:[%s275 + $0xb0] sm:$0xff]
          %v474 = vld [vmem:[%s275 + $0xb8] sm:$0xff]
          %v475 = vld [vmem:[%s275 + $0xc0] sm:$0xff]
          %v476 = vld [vmem:[%s275 + $0xc8] sm:$0xff]
          %v477 = vld [vmem:[%s275 + $0xd0] sm:$0xff]
          %v478 = vld [vmem:[%s275 + $0xd8] sm:$0xff]
          %v479 = vld [vmem:[%s275 + $0xe0] sm:$0xff]
          %v480 = vld [vmem:[%s275 + $0xe8] sm:$0xff]
          %v481 = vld [vmem:[%s275 + $0xf0] sm:$0xff]
          %v482 = vld [vmem:[%s275 + $0xf8] sm:$0xff]
          %v483 = vld [vmem:[%s275 + $0x100] sm:$0xff]
          %v484 = vld [vmem:[%s275 + $0x108] sm:$0xff]
          %v485 = vld [vmem:[%s275 + $0x110] sm:$0xff]
          %v486 = vld [vmem:[%s275 + $0x118] sm:$0xff]
          %v487 = vld [vmem:[%s275 + $0x120] sm:$0xff]
          %v488 = vld [vmem:[%s275 + $0x128] sm:$0xff]
          %v489 = vld [vmem:[%s275 + $0x130] sm:$0xff]
          %v490 = vld [vmem:[%s275 + $0x138] sm:$0xff]
          %v491 = vld [vmem:[%s275 + $0x140] sm:$0xff]
          %v492 = vld [vmem:[%s275 + $0x148] sm:$0xff]
          %v493 = vld [vmem:[%s275 + $0x150] sm:$0xff]
          %v494 = vld [vmem:[%s275 + $0x158] sm:$0xff]
          %v495 = vld [vmem:[%s275 + $0x160] sm:$0xff]
          %v496 = vld [vmem:[%s275 + $0x168] sm:$0xff]
          %v497 = vld [vmem:[%s275 + $0x170] sm:$0xff]
          %v498 = vld [vmem:[%s275 + $0x178] sm:$0xff]
          %v499 = vld [vmem:[%s275 + $0x180] sm:$0xff]
          %v500 = vld [vmem:[%s275 + $0x188] sm:$0xff]
          %v501 = vld [vmem:[%s275 + $0x190] sm:$0xff]
          %v502 = vld [vmem:[%s275 + $0x198] sm:$0xff]
          %v503 = vld [vmem:[%s275 + $0x1a0] sm:$0xff]
          %v504 = vld [vmem:[%s275 + $0x1a8] sm:$0xff]
          %v505 = vld [vmem:[%s275 + $0x1b0] sm:$0xff]
          %v506 = vld [vmem:[%s275 + $0x1b8] sm:$0xff]
          %v507 = vld [vmem:[%s275 + $0x1c0] sm:$0xff]
          %v508 = vld [vmem:[%s275 + $0x1c8] sm:$0xff]
          %v509 = vld [vmem:[%s275 + $0x1d0] sm:$0xff]
          %v510 = vld [vmem:[%s275 + $0x1d8] sm:$0xff]
          %v511 = vld [vmem:[%s275 + $0x1e0] sm:$0xff]
          %v512 = vld [vmem:[%s275 + $0x1e8] sm:$0xff]
          %v513 = vld [vmem:[%s275 + $0x1f0] sm:$0xff]
          %v514 = vld [vmem:[%s275 + $0x1f8] sm:$0xff]
          %515 = vst [vmem:[#allocation2 + $0x8] sm:$0xff] %v451
          %516 = vst [vmem:[#allocation2 + $0x18] sm:$0xff] %v452
          %517 = vst [vmem:[#allocation2 + $0x28] sm:$0xff] %v453
          %518 = vst [vmem:[#allocation2 + $0x38] sm:$0xff] %v454
          %519 = vst [vmem:[#allocation2 + $0x48] sm:$0xff] %v455
          %520 = vst [vmem:[#allocation2 + $0x58] sm:$0xff] %v456
          %521 = vst [vmem:[#allocation2 + $0x68] sm:$0xff] %v457
          %522 = vst [vmem:[#allocation2 + $0x78] sm:$0xff] %v458
          %523 = vst [vmem:[#allocation2 + $0x88] sm:$0xff] %v459
          %524 = vst [vmem:[#allocation2 + $0x98] sm:$0xff] %v460
          %525 = vst [vmem:[#allocation2 + $0xa8] sm:$0xff] %v461
          %526 = vst [vmem:[#allocation2 + $0xb8] sm:$0xff] %v462
          %527 = vst [vmem:[#allocation2 + $0xc8] sm:$0xff] %v463
          %528 = vst [vmem:[#allocation2 + $0xd8] sm:$0xff] %v464
          %529 = vst [vmem:[#allocation2 + $0xe8] sm:$0xff] %v465
          %530 = vst [vmem:[#allocation2 + $0xf8] sm:$0xff] %v466
          %531 = vst [vmem:[#allocation2 + $0x108] sm:$0xff] %v467
          %532 = vst [vmem:[#allocation2 + $0x118] sm:$0xff] %v468
          %533 = vst [vmem:[#allocation2 + $0x128] sm:$0xff] %v469
          %534 = vst [vmem:[#allocation2 + $0x138] sm:$0xff] %v470
          %535 = vst [vmem:[#allocation2 + $0x148] sm:$0xff] %v471
          %536 = vst [vmem:[#allocation2 + $0x158] sm:$0xff] %v472
          %537 = vst [vmem:[#allocation2 + $0x168] sm:$0xff] %v473
          %538 = vst [vmem:[#allocation2 + $0x178] sm:$0xff] %v474
          %539 = vst [vmem:[#allocation2 + $0x188] sm:$0xff] %v475
          %540 = vst [vmem:[#allocation2 + $0x198] sm:$0xff] %v476
          %541 = vst [vmem:[#allocation2 + $0x1a8] sm:$0xff] %v477
          %542 = vst [vmem:[#allocation2 + $0x1b8] sm:$0xff] %v478
          %543 = vst [vmem:[#allocation2 + $0x1c8] sm:$0xff] %v479
          %544 = vst [vmem:[#allocation2 + $0x1d8] sm:$0xff] %v480
          %545 = vst [vmem:[#allocation2 + $0x1e8] sm:$0xff] %v481
          %546 = vst [vmem:[#allocation2 + $0x1f8] sm:$0xff] %v482
          %547 = vst [vmem:[#allocation2 + $0x208] sm:$0xff] %v483
          %548 = vst [vmem:[#allocation2 + $0x218] sm:$0xff] %v484
          %549 = vst [vmem:[#allocation2 + $0x228] sm:$0xff] %v485
          %550 = vst [vmem:[#allocation2 + $0x238] sm:$0xff] %v486
          %551 = vst [vmem:[#allocation2 + $0x248] sm:$0xff] %v487
          %552 = vst [vmem:[#allocation2 + $0x258] sm:$0xff] %v488
          %553 = vst [vmem:[#allocation2 + $0x268] sm:$0xff] %v489
          %554 = vst [vmem:[#allocation2 + $0x278] sm:$0xff] %v490
          %555 = vst [vmem:[#allocation2 + $0x288] sm:$0xff] %v491
          %556 = vst [vmem:[#allocation2 + $0x298] sm:$0xff] %v492
          %557 = vst [vmem:[#allocation2 + $0x2a8] sm:$0xff] %v493
          %558 = vst [vmem:[#allocation2 + $0x2b8] sm:$0xff] %v494
          %559 = vst [vmem:[#allocation2 + $0x2c8] sm:$0xff] %v495
          %560 = vst [vmem:[#allocation2 + $0x2d8] sm:$0xff] %v496
          %561 = vst [vmem:[#allocation2 + $0x2e8] sm:$0xff] %v497
          %562 = vst [vmem:[#allocation2 + $0x2f8] sm:$0xff] %v498
          %563 = vst [vmem:[#allocation2 + $0x308] sm:$0xff] %v499
          %564 = vst [vmem:[#allocation2 + $0x318] sm:$0xff] %v500
          %565 = vst [vmem:[#allocation2 + $0x328] sm:$0xff] %v501
          %566 = vst [vmem:[#allocation2 + $0x338] sm:$0xff] %v502
          %567 = vst [vmem:[#allocation2 + $0x348] sm:$0xff] %v503
          %568 = vst [vmem:[#allocation2 + $0x358] sm:$0xff] %v504
          %569 = vst [vmem:[#allocation2 + $0x368] sm:$0xff] %v505
          %570 = vst [vmem:[#allocation2 + $0x378] sm:$0xff] %v506
          %571 = vst [vmem:[#allocation2 + $0x388] sm:$0xff] %v507
          %572 = vst [vmem:[#allocation2 + $0x398] sm:$0xff] %v508
          %573 = vst [vmem:[#allocation2 + $0x3a8] sm:$0xff] %v509
          %574 = vst [vmem:[#allocation2 + $0x3b8] sm:$0xff] %v510
          %575 = vst [vmem:[#allocation2 + $0x3c8] sm:$0xff] %v511
          %576 = vst [vmem:[#allocation2 + $0x3d8] sm:$0xff] %v512
          %577 = vst [vmem:[#allocation2 + $0x3e8] sm:$0xff] %v513
          %578 = vst [vmem:[#allocation2 + $0x3f8] sm:$0xff] %v514
        $region56: #{tpu_custom_call.1} parent=35 // pred_fallthru
          _
        %v579 = vld [vmem:[#allocation2] sm:$0xff]
        %v580 = vld [vmem:[#allocation2 + $0x8] sm:$0xff]
        %v581 = vld [vmem:[#allocation2 + $0x10] sm:$0xff]
        %v582 = vld [vmem:[#allocation2 + $0x18] sm:$0xff]
        %v583 = vld [vmem:[#allocation2 + $0x20] sm:$0xff]
        %v584 = vld [vmem:[#allocation2 + $0x28] sm:$0xff]
        %v585 = vld [vmem:[#allocation2 + $0x30] sm:$0xff]
        %v586 = vld [vmem:[#allocation2 + $0x38] sm:$0xff]
        %v587 = vld [vmem:[#allocation2 + $0x40] sm:$0xff]
        %v588 = vld [vmem:[#allocation2 + $0x48] sm:$0xff]
        %v589 = vld [vmem:[#allocation2 + $0x50] sm:$0xff]
        %v590 = vld [vmem:[#allocation2 + $0x58] sm:$0xff]
        %v591 = vld [vmem:[#allocation2 + $0x60] sm:$0xff]
        %v592 = vld [vmem:[#allocation2 + $0x68] sm:$0xff]
        %v593 = vld [vmem:[#allocation2 + $0x70] sm:$0xff]
        %v594 = vld [vmem:[#allocation2 + $0x78] sm:$0xff]
        %v595 = vld [vmem:[#allocation2 + $0x80] sm:$0xff]
        %v596 = vld [vmem:[#allocation2 + $0x88] sm:$0xff]
        %v597 = vld [vmem:[#allocation2 + $0x90] sm:$0xff]
        %v598 = vld [vmem:[#allocation2 + $0x98] sm:$0xff]
        %v599 = vld [vmem:[#allocation2 + $0xa0] sm:$0xff]
        %v600 = vld [vmem:[#allocation2 + $0xa8] sm:$0xff]
        %v601 = vld [vmem:[#allocation2 + $0xb0] sm:$0xff]
        %v602 = vld [vmem:[#allocation2 + $0xb8] sm:$0xff]
        %v603 = vld [vmem:[#allocation2 + $0xc0] sm:$0xff]
        %v604 = vld [vmem:[#allocation2 + $0xc8] sm:$0xff]
        %v605 = vld [vmem:[#allocation2 + $0xd0] sm:$0xff]
        %v606 = vld [vmem:[#allocation2 + $0xd8] sm:$0xff]
        %v607 = vld [vmem:[#allocation2 + $0xe0] sm:$0xff]
        %v608 = vld [vmem:[#allocation2 + $0xe8] sm:$0xff]
        %v609 = vld [vmem:[#allocation2 + $0xf0] sm:$0xff]
        %v610 = vld [vmem:[#allocation2 + $0xf8] sm:$0xff]
        %v611 = vld [vmem:[#allocation2 + $0x100] sm:$0xff]
        %v612 = vld [vmem:[#allocation2 + $0x108] sm:$0xff]
        %v613 = vld [vmem:[#allocation2 + $0x110] sm:$0xff]
        %v614 = vld [vmem:[#allocation2 + $0x118] sm:$0xff]
        %v615 = vld [vmem:[#allocation2 + $0x120] sm:$0xff]
        %v616 = vld [vmem:[#allocation2 + $0x128] sm:$0xff]
        %v617 = vld [vmem:[#allocation2 + $0x130] sm:$0xff]
        %v618 = vld [vmem:[#allocation2 + $0x138] sm:$0xff]
        %v619 = vld [vmem:[#allocation2 + $0x140] sm:$0xff]
        %v620 = vld [vmem:[#allocation2 + $0x148] sm:$0xff]
        %v621 = vld [vmem:[#allocation2 + $0x150] sm:$0xff]
        %v622 = vld [vmem:[#allocation2 + $0x158] sm:$0xff]
        %v623 = vld [vmem:[#allocation2 + $0x160] sm:$0xff]
        %v624 = vld [vmem:[#allocation2 + $0x168] sm:$0xff]
        %v625 = vld [vmem:[#allocation2 + $0x170] sm:$0xff]
        %v626 = vld [vmem:[#allocation2 + $0x178] sm:$0xff]
        %v627 = vld [vmem:[#allocation2 + $0x180] sm:$0xff]
        %v628 = vld [vmem:[#allocation2 + $0x188] sm:$0xff]
        %v629 = vld [vmem:[#allocation2 + $0x190] sm:$0xff]
        %v630 = vld [vmem:[#allocation2 + $0x198] sm:$0xff]
        %v631 = vld [vmem:[#allocation2 + $0x1a0] sm:$0xff]
        %v632 = vld [vmem:[#allocation2 + $0x1a8] sm:$0xff]
        %v633 = vld [vmem:[#allocation2 + $0x1b0] sm:$0xff]
        %v634 = vld [vmem:[#allocation2 + $0x1b8] sm:$0xff]
        %v635 = vld [vmem:[#allocation2 + $0x1c0] sm:$0xff]
        %v636 = vld [vmem:[#allocation2 + $0x1c8] sm:$0xff]
        %v637 = vld [vmem:[#allocation2 + $0x1d0] sm:$0xff]
        %v638 = vld [vmem:[#allocation2 + $0x1d8] sm:$0xff]
        %v639 = vld [vmem:[#allocation2 + $0x1e0] sm:$0xff]
        %v640 = vld [vmem:[#allocation2 + $0x1e8] sm:$0xff]
        %v641 = vld [vmem:[#allocation2 + $0x1f0] sm:$0xff]
        %v642 = vld [vmem:[#allocation2 + $0x1f8] sm:$0xff]
        %v643 = vld [vmem:[#allocation2 + $0x200] sm:$0xff]
        %v644 = vld [vmem:[#allocation2 + $0x208] sm:$0xff]
        %v645 = vld [vmem:[#allocation2 + $0x210] sm:$0xff]
        %v646 = vld [vmem:[#allocation2 + $0x218] sm:$0xff]
        %v647 = vld [vmem:[#allocation2 + $0x220] sm:$0xff]
        %v648 = vld [vmem:[#allocation2 + $0x228] sm:$0xff]
        %v649 = vld [vmem:[#allocation2 + $0x230] sm:$0xff]
        %v650 = vld [vmem:[#allocation2 + $0x238] sm:$0xff]
        %v651 = vld [vmem:[#allocation2 + $0x240] sm:$0xff]
        %v652 = vld [vmem:[#allocation2 + $0x248] sm:$0xff]
        %v653 = vld [vmem:[#allocation2 + $0x250] sm:$0xff]
        %v654 = vld [vmem:[#allocation2 + $0x258] sm:$0xff]
        %v655 = vld [vmem:[#allocation2 + $0x260] sm:$0xff]
        %v656 = vld [vmem:[#allocation2 + $0x268] sm:$0xff]
        %v657 = vld [vmem:[#allocation2 + $0x270] sm:$0xff]
        %v658 = vld [vmem:[#allocation2 + $0x278] sm:$0xff]
        %v659 = vld [vmem:[#allocation2 + $0x280] sm:$0xff]
        %v660 = vld [vmem:[#allocation2 + $0x288] sm:$0xff]
        %v661 = vld [vmem:[#allocation2 + $0x290] sm:$0xff]
        %v662 = vld [vmem:[#allocation2 + $0x298] sm:$0xff]
        %v663 = vld [vmem:[#allocation2 + $0x2a0] sm:$0xff]
        %v664 = vld [vmem:[#allocation2 + $0x2a8] sm:$0xff]
        %v665 = vld [vmem:[#allocation2 + $0x2b0] sm:$0xff]
        %v666 = vld [vmem:[#allocation2 + $0x2b8] sm:$0xff]
        %v667 = vld [vmem:[#allocation2 + $0x2c0] sm:$0xff]
        %v668 = vld [vmem:[#allocation2 + $0x2c8] sm:$0xff]
        %v669 = vld [vmem:[#allocation2 + $0x2d0] sm:$0xff]
        %v670 = vld [vmem:[#allocation2 + $0x2d8] sm:$0xff]
        %v671 = vld [vmem:[#allocation2 + $0x2e0] sm:$0xff]
        %v672 = vld [vmem:[#allocation2 + $0x2e8] sm:$0xff]
        %v673 = vld [vmem:[#allocation2 + $0x2f0] sm:$0xff]
        %v674 = vld [vmem:[#allocation2 + $0x2f8] sm:$0xff]
        %v675 = vld [vmem:[#allocation2 + $0x300] sm:$0xff]
        %v676 = vld [vmem:[#allocation2 + $0x308] sm:$0xff]
        %v677 = vld [vmem:[#allocation2 + $0x310] sm:$0xff]
        %v678 = vld [vmem:[#allocation2 + $0x318] sm:$0xff]
        %v679 = vld [vmem:[#allocation2 + $0x320] sm:$0xff]
        %v680 = vld [vmem:[#allocation2 + $0x328] sm:$0xff]
        %v681 = vld [vmem:[#allocation2 + $0x330] sm:$0xff]
        %v682 = vld [vmem:[#allocation2 + $0x338] sm:$0xff]
        %v683 = vld [vmem:[#allocation2 + $0x340] sm:$0xff]
        %v684 = vld [vmem:[#allocation2 + $0x348] sm:$0xff]
        %v685 = vld [vmem:[#allocation2 + $0x350] sm:$0xff]
        %v686 = vld [vmem:[#allocation2 + $0x358] sm:$0xff]
        %v687 = vld [vmem:[#allocation2 + $0x360] sm:$0xff]
        %v688 = vld [vmem:[#allocation2 + $0x368] sm:$0xff]
        %v689 = vld [vmem:[#allocation2 + $0x370] sm:$0xff]
        %v690 = vld [vmem:[#allocation2 + $0x378] sm:$0xff]
        %v691 = vld [vmem:[#allocation2 + $0x380] sm:$0xff]
        %v692 = vld [vmem:[#allocation2 + $0x388] sm:$0xff]
        %v693 = vld [vmem:[#allocation2 + $0x390] sm:$0xff]
        %v694 = vld [vmem:[#allocation2 + $0x398] sm:$0xff]
        %v695 = vld [vmem:[#allocation2 + $0x3a0] sm:$0xff]
        %v696 = vld [vmem:[#allocation2 + $0x3a8] sm:$0xff]
        %v697 = vld [vmem:[#allocation2 + $0x3b0] sm:$0xff]
        %v698 = vld [vmem:[#allocation2 + $0x3b8] sm:$0xff]
        %v699 = vld [vmem:[#allocation2 + $0x3c0] sm:$0xff]
        %v700 = vld [vmem:[#allocation2 + $0x3c8] sm:$0xff]
        %v701 = vld [vmem:[#allocation2 + $0x3d0] sm:$0xff]
        %v702 = vld [vmem:[#allocation2 + $0x3d8] sm:$0xff]
        %v703 = vld [vmem:[#allocation2 + $0x3e0] sm:$0xff]
        %v704 = vld [vmem:[#allocation2 + $0x3e8] sm:$0xff]
        %v705 = vld [vmem:[#allocation2 + $0x3f0] sm:$0xff]
        %v706 = vld [vmem:[#allocation2 + $0x3f8] sm:$0xff]
        %v707 = vld [vmem:[#allocation8] sm:$0xff]
        %v708 = vld [vmem:[#allocation8 + $0x8] sm:$0xff]
        %v709 = vld [vmem:[#allocation8 + $0x10] sm:$0xff]
        %v710 = vld [vmem:[#allocation8 + $0x18] sm:$0xff]
        %v711 = vld [vmem:[#allocation8 + $0x20] sm:$0xff]
        %v712 = vld [vmem:[#allocation8 + $0x28] sm:$0xff]
        %v713 = vld [vmem:[#allocation8 + $0x30] sm:$0xff]
        %v714 = vld [vmem:[#allocation8 + $0x38] sm:$0xff]
        %v715 = vld [vmem:[#allocation8 + $0x40] sm:$0xff]
        %v716 = vld [vmem:[#allocation8 + $0x48] sm:$0xff]
        %v717 = vld [vmem:[#allocation8 + $0x50] sm:$0xff]
        %v718 = vld [vmem:[#allocation8 + $0x58] sm:$0xff]
        %v719 = vld [vmem:[#allocation8 + $0x60] sm:$0xff]
        %v720 = vld [vmem:[#allocation8 + $0x68] sm:$0xff]
        %v721 = vld [vmem:[#allocation8 + $0x70] sm:$0xff]
        %v722 = vld [vmem:[#allocation8 + $0x78] sm:$0xff]
        %v723 = vld [vmem:[#allocation8 + $0x80] sm:$0xff]
        %v724 = vld [vmem:[#allocation8 + $0x88] sm:$0xff]
        %v725 = vld [vmem:[#allocation8 + $0x90] sm:$0xff]
        %v726 = vld [vmem:[#allocation8 + $0x98] sm:$0xff]
        %v727 = vld [vmem:[#allocation8 + $0xa0] sm:$0xff]
        %v728 = vld [vmem:[#allocation8 + $0xa8] sm:$0xff]
        %v729 = vld [vmem:[#allocation8 + $0xb0] sm:$0xff]
        %v730 = vld [vmem:[#allocation8 + $0xb8] sm:$0xff]
        %v731 = vld [vmem:[#allocation8 + $0xc0] sm:$0xff]
        %v732 = vld [vmem:[#allocation8 + $0xc8] sm:$0xff]
        %v733 = vld [vmem:[#allocation8 + $0xd0] sm:$0xff]
        %v734 = vld [vmem:[#allocation8 + $0xd8] sm:$0xff]
        %v735 = vld [vmem:[#allocation8 + $0xe0] sm:$0xff]
        %v736 = vld [vmem:[#allocation8 + $0xe8] sm:$0xff]
        %v737 = vld [vmem:[#allocation8 + $0xf0] sm:$0xff]
        %v738 = vld [vmem:[#allocation8 + $0xf8] sm:$0xff]
        %v739 = vld [vmem:[#allocation8 + $0x100] sm:$0xff]
        %v740 = vld [vmem:[#allocation8 + $0x108] sm:$0xff]
        %v741 = vld [vmem:[#allocation8 + $0x110] sm:$0xff]
        %v742 = vld [vmem:[#allocation8 + $0x118] sm:$0xff]
        %v743 = vld [vmem:[#allocation8 + $0x120] sm:$0xff]
        %v744 = vld [vmem:[#allocation8 + $0x128] sm:$0xff]
        %v745 = vld [vmem:[#allocation8 + $0x130] sm:$0xff]
        %v746 = vld [vmem:[#allocation8 + $0x138] sm:$0xff]
        %v747 = vld [vmem:[#allocation8 + $0x140] sm:$0xff]
        %v748 = vld [vmem:[#allocation8 + $0x148] sm:$0xff]
        %v749 = vld [vmem:[#allocation8 + $0x150] sm:$0xff]
        %v750 = vld [vmem:[#allocation8 + $0x158] sm:$0xff]
        %v751 = vld [vmem:[#allocation8 + $0x160] sm:$0xff]
        %v752 = vld [vmem:[#allocation8 + $0x168] sm:$0xff]
        %v753 = vld [vmem:[#allocation8 + $0x170] sm:$0xff]
        %v754 = vld [vmem:[#allocation8 + $0x178] sm:$0xff]
        %v755 = vld [vmem:[#allocation8 + $0x180] sm:$0xff]
        %v756 = vld [vmem:[#allocation8 + $0x188] sm:$0xff]
        %v757 = vld [vmem:[#allocation8 + $0x190] sm:$0xff]
        %v758 = vld [vmem:[#allocation8 + $0x198] sm:$0xff]
        %v759 = vld [vmem:[#allocation8 + $0x1a0] sm:$0xff]
        %v760 = vld [vmem:[#allocation8 + $0x1a8] sm:$0xff]
        %v761 = vld [vmem:[#allocation8 + $0x1b0] sm:$0xff]
        %v762 = vld [vmem:[#allocation8 + $0x1b8] sm:$0xff]
        %v763 = vld [vmem:[#allocation8 + $0x1c0] sm:$0xff]
        %v764 = vld [vmem:[#allocation8 + $0x1c8] sm:$0xff]
        %v765 = vld [vmem:[#allocation8 + $0x1d0] sm:$0xff]
        %v766 = vld [vmem:[#allocation8 + $0x1d8] sm:$0xff]
        %v767 = vld [vmem:[#allocation8 + $0x1e0] sm:$0xff]
        %v768 = vld [vmem:[#allocation8 + $0x1e8] sm:$0xff]
        %v769 = vld [vmem:[#allocation8 + $0x1f0] sm:$0xff]
        %v770 = vld [vmem:[#allocation8 + $0x1f8] sm:$0xff]
        %v771 = vld [vmem:[#allocation8 + $0x200] sm:$0xff]
        %v772 = vld [vmem:[#allocation8 + $0x208] sm:$0xff]
        %v773 = vld [vmem:[#allocation8 + $0x210] sm:$0xff]
        %v774 = vld [vmem:[#allocation8 + $0x218] sm:$0xff]
        %v775 = vld [vmem:[#allocation8 + $0x220] sm:$0xff]
        %v776 = vld [vmem:[#allocation8 + $0x228] sm:$0xff]
        %v777 = vld [vmem:[#allocation8 + $0x230] sm:$0xff]
        %v778 = vld [vmem:[#allocation8 + $0x238] sm:$0xff]
        %v779 = vld [vmem:[#allocation8 + $0x240] sm:$0xff]
        %v780 = vld [vmem:[#allocation8 + $0x248] sm:$0xff]
        %v781 = vld [vmem:[#allocation8 + $0x250] sm:$0xff]
        %v782 = vld [vmem:[#allocation8 + $0x258] sm:$0xff]
        %v783 = vld [vmem:[#allocation8 + $0x260] sm:$0xff]
        %v784 = vld [vmem:[#allocation8 + $0x268] sm:$0xff]
        %v785 = vld [vmem:[#allocation8 + $0x270] sm:$0xff]
        %v786 = vld [vmem:[#allocation8 + $0x278] sm:$0xff]
        %v787 = vld [vmem:[#allocation8 + $0x280] sm:$0xff]
        %v788 = vld [vmem:[#allocation8 + $0x288] sm:$0xff]
        %v789 = vld [vmem:[#allocation8 + $0x290] sm:$0xff]
        %v790 = vld [vmem:[#allocation8 + $0x298] sm:$0xff]
        %v791 = vld [vmem:[#allocation8 + $0x2a0] sm:$0xff]
        %v792 = vld [vmem:[#allocation8 + $0x2a8] sm:$0xff]
        %v793 = vld [vmem:[#allocation8 + $0x2b0] sm:$0xff]
        %v794 = vld [vmem:[#allocation8 + $0x2b8] sm:$0xff]
        %v795 = vld [vmem:[#allocation8 + $0x2c0] sm:$0xff]
        %v796 = vld [vmem:[#allocation8 + $0x2c8] sm:$0xff]
        %v797 = vld [vmem:[#allocation8 + $0x2d0] sm:$0xff]
        %v798 = vld [vmem:[#allocation8 + $0x2d8] sm:$0xff]
        %v799 = vld [vmem:[#allocation8 + $0x2e0] sm:$0xff]
        %v800 = vld [vmem:[#allocation8 + $0x2e8] sm:$0xff]
        %v801 = vld [vmem:[#allocation8 + $0x2f0] sm:$0xff]
        %v802 = vld [vmem:[#allocation8 + $0x2f8] sm:$0xff]
        %v803 = vld [vmem:[#allocation8 + $0x300] sm:$0xff]
        %v804 = vld [vmem:[#allocation8 + $0x308] sm:$0xff]
        %v805 = vld [vmem:[#allocation8 + $0x310] sm:$0xff]
        %v806 = vld [vmem:[#allocation8 + $0x318] sm:$0xff]
        %v807 = vld [vmem:[#allocation8 + $0x320] sm:$0xff]
        %v808 = vld [vmem:[#allocation8 + $0x328] sm:$0xff]
        %v809 = vld [vmem:[#allocation8 + $0x330] sm:$0xff]
        %v810 = vld [vmem:[#allocation8 + $0x338] sm:$0xff]
        %v811 = vld [vmem:[#allocation8 + $0x340] sm:$0xff]
        %v812 = vld [vmem:[#allocation8 + $0x348] sm:$0xff]
        %v813 = vld [vmem:[#allocation8 + $0x350] sm:$0xff]
        %v814 = vld [vmem:[#allocation8 + $0x358] sm:$0xff]
        %v815 = vld [vmem:[#allocation8 + $0x360] sm:$0xff]
        %v816 = vld [vmem:[#allocation8 + $0x368] sm:$0xff]
        %v817 = vld [vmem:[#allocation8 + $0x370] sm:$0xff]
        %v818 = vld [vmem:[#allocation8 + $0x378] sm:$0xff]
        %v819 = vld [vmem:[#allocation8 + $0x380] sm:$0xff]
        %v820 = vld [vmem:[#allocation8 + $0x388] sm:$0xff]
        %v821 = vld [vmem:[#allocation8 + $0x390] sm:$0xff]
        %v822 = vld [vmem:[#allocation8 + $0x398] sm:$0xff]
        %v823 = vld [vmem:[#allocation8 + $0x3a0] sm:$0xff]
        %v824 = vld [vmem:[#allocation8 + $0x3a8] sm:$0xff]
        %v825 = vld [vmem:[#allocation8 + $0x3b0] sm:$0xff]
        %v826 = vld [vmem:[#allocation8 + $0x3b8] sm:$0xff]
        %v827 = vld [vmem:[#allocation8 + $0x3c0] sm:$0xff]
        %v828 = vld [vmem:[#allocation8 + $0x3c8] sm:$0xff]
        %v829 = vld [vmem:[#allocation8 + $0x3d0] sm:$0xff]
        %v830 = vld [vmem:[#allocation8 + $0x3d8] sm:$0xff]
        %v831 = vld [vmem:[#allocation8 + $0x3e0] sm:$0xff]
        %v832 = vld [vmem:[#allocation8 + $0x3e8] sm:$0xff]
        %v833 = vld [vmem:[#allocation8 + $0x3f0] sm:$0xff]
        %v834 = vld [vmem:[#allocation8 + $0x3f8] sm:$0xff]
        %v835 = vld [vmem:[#allocation9] sm:$0xf]
        %v837 = vlaneseq
        %v838 = vshrl.u32 %v837, 7
        %v839 = vsub.s32 0, %v838
        %v840 = vrot.slane %v835, %v839
        %v841 = vlaneseq
        %v842 = vshrl.u32 %v841, 7
        %v843 = vsub.s32 1, %v842
        %v844 = vrot.slane %v835, %v843
        %v845 = vlaneseq
        %v846 = vshrl.u32 %v845, 7
        %v847 = vsub.s32 2, %v846
        %v848 = vrot.slane %v835, %v847
        %v849 = vlaneseq
        %v850 = vshrl.u32 %v849, 7
        %v851 = vsub.s32 3, %v850
        %v852 = vrot.slane %v835, %v851
        %857 = vmatprep.subr.mxu0 %v708
        %858 = vmatpush1.msra.mxu0 %v707
        %859 = vmatprep.subr.mxu0 %v712
        %860 = vmatpush1.msra.mxu0 %v711
        %861 = vmatprep.subr.mxu0 %v716
        %862 = vmatpush1.msra.mxu0 %v715
        %863 = vmatprep.subr.mxu0 %v720
        %864 = vmatpush1.msra.mxu0 %v719
        %865 = vmatprep.subr.mxu0 %v724
        %866 = vmatpush1.msra.mxu0 %v723
        %867 = vmatprep.subr.mxu0 %v728
        %868 = vmatpush1.msra.mxu0 %v727
        %869 = vmatprep.subr.mxu0 %v732
        %870 = vmatpush1.msra.mxu0 %v731
        %871 = vmatprep.subr.mxu0 %v736
        %872 = vmatpush1.msra.mxu0 %v735
        %873 = vmatprep.subr.mxu0 %v740
        %874 = vmatpush1.msra.mxu0 %v739
        %875 = vmatprep.subr.mxu0 %v744
        %876 = vmatpush1.msra.mxu0 %v743
        %877 = vmatprep.subr.mxu0 %v748
        %878 = vmatpush1.msra.mxu0 %v747
        %879 = vmatprep.subr.mxu0 %v752
        %880 = vmatpush1.msra.mxu0 %v751
        %881 = vmatprep.subr.mxu0 %v756
        %882 = vmatpush1.msra.mxu0 %v755
        %883 = vmatprep.subr.mxu0 %v760
        %884 = vmatpush1.msra.mxu0 %v759
        %885 = vmatprep.subr.mxu0 %v764
        %886 = vmatpush1.msra.mxu0 %v763
        %887 = vmatprep.subr.mxu0 %v768
        %888 = vmatpush1.msra.mxu0 %v767
        %889 = vmatprep.subr.mxu0 %v772
        %890 = vmatpush1.msra.mxu0 %v771
        %891 = vmatprep.subr.mxu0 %v776
        %892 = vmatpush1.msra.mxu0 %v775
        %893 = vmatprep.subr.mxu0 %v780
        %894 = vmatpush1.msra.mxu0 %v779
        %895 = vmatprep.subr.mxu0 %v784
        %896 = vmatpush1.msra.mxu0 %v783
        %897 = vmatprep.subr.mxu0 %v788
        %898 = vmatpush1.msra.mxu0 %v787
        %899 = vmatprep.subr.mxu0 %v792
        %900 = vmatpush1.msra.mxu0 %v791
        %901 = vmatprep.subr.mxu0 %v796
        %902 = vmatpush1.msra.mxu0 %v795
        %903 = vmatprep.subr.mxu0 %v800
        %904 = vmatpush1.msra.mxu0 %v799
        %905 = vmatprep.subr.mxu0 %v804
        %906 = vmatpush1.msra.mxu0 %v803
        %907 = vmatprep.subr.mxu0 %v808
        %908 = vmatpush1.msra.mxu0 %v807
        %909 = vmatprep.subr.mxu0 %v812
        %910 = vmatpush1.msra.mxu0 %v811
        %911 = vmatprep.subr.mxu0 %v816
        %912 = vmatpush1.msra.mxu0 %v815
        %913 = vmatprep.subr.mxu0 %v820
        %914 = vmatpush1.msra.mxu0 %v819
        %915 = vmatprep.subr.mxu0 %v824
        %916 = vmatpush1.msra.mxu0 %v823
        %917 = vmatprep.subr.mxu0 %v828
        %918 = vmatpush1.msra.mxu0 %v827
        %919 = vmatprep.subr.mxu0 %v832
        %920 = vmatpush1.msra.mxu0 %v831
        %921 = vmatprep.mubr.f32.mxu0 %v580
        %922 = vmatmul.mubr.f32.gmra.mrb[0].mxu0 %v579
        %v923 = vpop.f32.mrb[0].mxu0
        %v924 = vadd.f32 %v840, %v923
        %v925 = vpop.f32.mrb[0].mxu0
        %v926 = vadd.f32 %v844, %v925
        %927 = vmatprep.mubr.f32.mxu0 %v582
        %928 = vmatmul.mubr.f32.gmra.mrb[0].mxu0 %v581
        %v929 = vpop.f32.mrb[0].mxu0
        %v930 = vadd.f32 %v840, %v929
        %v931 = vpop.f32.mrb[0].mxu0
        %v932 = vadd.f32 %v844, %v931
        %933 = vmatprep.mubr.f32.mxu0 %v584
        %934 = vmatmul.mubr.f32.gmra.mrb[0].mxu0 %v583
        %v935 = vpop.f32.mrb[0].mxu0
        %v936 = vadd.f32 %v840, %v935
        %v937 = vpop.f32.mrb[0].mxu0
        %v938 = vadd.f32 %v844, %v937
        %939 = vmatprep.mubr.f32.mxu0 %v586
        %940 = vmatmul.mubr.f32.gmra.mrb[0].mxu0 %v585
        %v941 = vpop.f32.mrb[0].mxu0
        %v942 = vadd.f32 %v840, %v941
        %v943 = vpop.f32.mrb[0].mxu0
        %v944 = vadd.f32 %v844, %v943
        %945 = vmatprep.mubr.f32.mxu0 %v588
        %946 = vmatmul.mubr.f32.gmra.mrb[0].mxu0 %v587
        %v947 = vpop.f32.mrb[0].mxu0
        %v948 = vadd.f32 %v840, %v947
        %v949 = vpop.f32.mrb[0].mxu0
        %v950 = vadd.f32 %v844, %v949
        %951 = vmatprep.mubr.f32.mxu0 %v590
        %952 = vmatmul.mubr.f32.gmra.mrb[0].mxu0 %v589
        %v953 = vpop.f32.mrb[0].mxu0
        %v954 = vadd.f32 %v840, %v953
        %v955 = vpop.f32.mrb[0].mxu0
        %v956 = vadd.f32 %v844, %v955
        %957 = vmatprep.mubr.f32.mxu0 %v592
        %958 = vmatmul.mubr.f32.gmra.mrb[0].mxu0 %v591
        %v959 = vpop.f32.mrb[0].mxu0
        %v960 = vadd.f32 %v840, %v959
        %v961 = vpop.f32.mrb[0].mxu0
        %v962 = vadd.f32 %v844, %v961
        %963 = vmatprep.mubr.f32.mxu0 %v594
        %964 = vmatmul.mubr.f32.gmra.mrb[0].mxu0 %v593
        %v965 = vpop.f32.mrb[0].mxu0
        %v966 = vadd.f32 %v840, %v965
        %v967 = vpop.f32.mrb[0].mxu0
        %v968 = vadd.f32 %v844, %v967
        %969 = vmatprep.mubr.f32.mxu0 %v596
        %970 = vmatmul.mubr.f32.gmra.mrb[0].mxu0 %v595
        %v971 = vpop.f32.mrb[0].mxu0
        %v972 = vadd.f32 %v840, %v971
        %v973 = vpop.f32.mrb[0].mxu0
        %v974 = vadd.f32 %v844, %v973
        %975 = vmatprep.mubr.f32.mxu0 %v598
        %976 = vmatmul.mubr.f32.gmra.mrb[0].mxu0 %v597
        %v977 = vpop.f32.mrb[0].mxu0
        %v978 = vadd.f32 %v840, %v977
        %v979 = vpop.f32.mrb[0].mxu0
        %v980 = vadd.f32 %v844, %v979
        %981 = vmatprep.mubr.f32.mxu0 %v600
        %982 = vmatmul.mubr.f32.gmra.mrb[0].mxu0 %v599
        %v983 = vpop.f32.mrb[0].mxu0
        %v984 = vadd.f32 %v840, %v983
        %v985 = vpop.f32.mrb[0].mxu0
        %v986 = vadd.f32 %v844, %v985
        %987 = vmatprep.mubr.f32.mxu0 %v602
        %988 = vmatmul.mubr.f32.gmra.mrb[0].mxu0 %v601
        %v989 = vpop.f32.mrb[0].mxu0
        %v990 = vadd.f32 %v840, %v989
        %v991 = vpop.f32.mrb[0].mxu0
        %v992 = vadd.f32 %v844, %v991
        %993 = vmatprep.mubr.f32.mxu0 %v604
        %994 = vmatmul.mubr.f32.gmra.mrb[0].mxu0 %v603
        %v995 = vpop.f32.mrb[0].mxu0
        %v996 = vadd.f32 %v840, %v995
        %v997 = vpop.f32.mrb[0].mxu0
        %v998 = vadd.f32 %v844, %v997
        %999 = vmatprep.mubr.f32.mxu0 %v606
        %1000 = vmatmul.mubr.f32.gmra.mrb[0].mxu0 %v605
        %v1001 = vpop.f32.mrb[0].mxu0
        %v1002 = vadd.f32 %v840, %v1001
        %v1003 = vpop.f32.mrb[0].mxu0
        %v1004 = vadd.f32 %v844, %v1003
        %1005 = vmatprep.mubr.f32.mxu0 %v608
        %1006 = vmatmul.mubr.f32.gmra.mrb[0].mxu0 %v607
        %v1007 = vpop.f32.mrb[0].mxu0
        %v1008 = vadd.f32 %v840, %v1007
        %v1009 = vpop.f32.mrb[0].mxu0
        %v1010 = vadd.f32 %v844, %v1009
        %1011 = vmatprep.mubr.f32.mxu0 %v610
        %1012 = vmatmul.mubr.f32.gmra.mrb[0].mxu0 %v609
        %v1013 = vpop.f32.mrb[0].mxu0
        %v1014 = vadd.f32 %v840, %v1013
        %v1015 = vpop.f32.mrb[0].mxu0
        %v1016 = vadd.f32 %v844, %v1015
        %1017 = vmatprep.mubr.f32.mxu0 %v612
        %1018 = vmatmul.mubr.f32.gmra.mrb[0].mxu0 %v611
        %v1019 = vpop.f32.mrb[0].mxu0
        %v1020 = vadd.f32 %v840, %v1019
        %v1021 = vpop.f32.mrb[0].mxu0
        %v1022 = vadd.f32 %v844, %v1021
        %1023 = vmatprep.mubr.f32.mxu0 %v614
        %1024 = vmatmul.mubr.f32.gmra.mrb[0].mxu0 %v613
        %v1025 = vpop.f32.mrb[0].mxu0
        %v1026 = vadd.f32 %v840, %v1025
        %v1027 = vpop.f32.mrb[0].mxu0
        %v1028 = vadd.f32 %v844, %v1027
        %1029 = vmatprep.mubr.f32.mxu0 %v616
        %1030 = vmatmul.mubr.f32.gmra.mrb[0].mxu0 %v615
        %v1031 = vpop.f32.mrb[0].mxu0
        %v1032 = vadd.f32 %v840, %v1031
        %v1033 = vpop.f32.mrb[0].mxu0
        %v1034 = vadd.f32 %v844, %v1033
        %1035 = vmatprep.mubr.f32.mxu0 %v618
        %1036 = vmatmul.mubr.f32.gmra.mrb[0].mxu0 %v617
        %v1037 = vpop.f32.mrb[0].mxu0
        %v1038 = vadd.f32 %v840, %v1037
        %v1039 = vpop.f32.mrb[0].mxu0
        %v1040 = vadd.f32 %v844, %v1039
        %1041 = vmatprep.mubr.f32.mxu0 %v620
        %1042 = vmatmul.mubr.f32.gmra.mrb[0].mxu0 %v619
        %v1043 = vpop.f32.mrb[0].mxu0
        %v1044 = vadd.f32 %v840, %v1043
        %v1045 = vpop.f32.mrb[0].mxu0
        %v1046 = vadd.f32 %v844, %v1045
        %1047 = vmatprep.mubr.f32.mxu0 %v622
        %1048 = vmatmul.mubr.f32.gmra.mrb[0].mxu0 %v621
        %v1049 = vpop.f32.mrb[0].mxu0
        %v1050 = vadd.f32 %v840, %v1049
        %v1051 = vpop.f32.mrb[0].mxu0
        %v1052 = vadd.f32 %v844, %v1051
        %1053 = vmatprep.mubr.f32.mxu0 %v624
        %1054 = vmatmul.mubr.f32.gmra.mrb[0].mxu0 %v623
        %v1055 = vpop.f32.mrb[0].mxu0
        %v1056 = vadd.f32 %v840, %v1055
        %v1057 = vpop.f32.mrb[0].mxu0
        %v1058 = vadd.f32 %v844, %v1057
        %1059 = vmatprep.mubr.f32.mxu0 %v626
        %1060 = vmatmul.mubr.f32.gmra.mrb[0].mxu0 %v625
        %v1061 = vpop.f32.mrb[0].mxu0
        %v1062 = vadd.f32 %v840, %v1061
        %v1063 = vpop.f32.mrb[0].mxu0
        %v1064 = vadd.f32 %v844, %v1063
        %1065 = vmatprep.mubr.f32.mxu0 %v628
        %1066 = vmatmul.mubr.f32.gmra.mrb[0].mxu0 %v627
        %v1067 = vpop.f32.mrb[0].mxu0
        %v1068 = vadd.f32 %v840, %v1067
        %v1069 = vpop.f32.mrb[0].mxu0
        %v1070 = vadd.f32 %v844, %v1069
        %1071 = vmatprep.mubr.f32.mxu0 %v630
        %1072 = vmatmul.mubr.f32.gmra.mrb[0].mxu0 %v629
        %v1073 = vpop.f32.mrb[0].mxu0
        %v1074 = vadd.f32 %v840, %v1073
        %v1075 = vpop.f32.mrb[0].mxu0
        %v1076 = vadd.f32 %v844, %v1075
        %1077 = vmatprep.mubr.f32.mxu0 %v632
        %1078 = vmatmul.mubr.f32.gmra.mrb[0].mxu0 %v631
        %v1079 = vpop.f32.mrb[0].mxu0
        %v1080 = vadd.f32 %v840, %v1079
        %v1081 = vpop.f32.mrb[0].mxu0
        %v1082 = vadd.f32 %v844, %v1081
        %1083 = vmatprep.mubr.f32.mxu0 %v634
        %1084 = vmatmul.mubr.f32.gmra.mrb[0].mxu0 %v633
        %v1085 = vpop.f32.mrb[0].mxu0
        %v1086 = vadd.f32 %v840, %v1085
        %v1087 = vpop.f32.mrb[0].mxu0
        %v1088 = vadd.f32 %v844, %v1087
        %1089 = vmatprep.mubr.f32.mxu0 %v636
        %1090 = vmatmul.mubr.f32.gmra.mrb[0].mxu0 %v635
        %v1091 = vpop.f32.mrb[0].mxu0
        %v1092 = vadd.f32 %v840, %v1091
        %v1093 = vpop.f32.mrb[0].mxu0
        %v1094 = vadd.f32 %v844, %v1093
        %1095 = vmatprep.mubr.f32.mxu0 %v638
        %1096 = vmatmul.mubr.f32.gmra.mrb[0].mxu0 %v637
        %v1097 = vpop.f32.mrb[0].mxu0
        %v1098 = vadd.f32 %v840, %v1097
        %v1099 = vpop.f32.mrb[0].mxu0
        %v1100 = vadd.f32 %v844, %v1099
        %1101 = vmatprep.mubr.f32.mxu0 %v640
        %1102 = vmatmul.mubr.f32.gmra.mrb[0].mxu0 %v639
        %v1103 = vpop.f32.mrb[0].mxu0
        %v1104 = vadd.f32 %v840, %v1103
        %v1105 = vpop.f32.mrb[0].mxu0
        %v1106 = vadd.f32 %v844, %v1105
        %1107 = vmatprep.mubr.f32.mxu0 %v642
        %1108 = vmatmul.mubr.f32.gmra.mrb[0].mxu0 %v641
        %v1109 = vpop.f32.mrb[0].mxu0
        %v1110 = vadd.f32 %v840, %v1109
        %v1111 = vpop.f32.mrb[0].mxu0
        %v1112 = vadd.f32 %v844, %v1111
        %1113 = vmatprep.mubr.f32.mxu0 %v644
        %1114 = vmatmul.mubr.f32.gmra.mrb[0].mxu0 %v643
        %v1115 = vpop.f32.mrb[0].mxu0
        %v1116 = vadd.f32 %v840, %v1115
        %v1117 = vpop.f32.mrb[0].mxu0
        %v1118 = vadd.f32 %v844, %v1117
        %1119 = vmatprep.mubr.f32.mxu0 %v646
        %1120 = vmatmul.mubr.f32.gmra.mrb[0].mxu0 %v645
        %v1121 = vpop.f32.mrb[0].mxu0
        %v1122 = vadd.f32 %v840, %v1121
        %v1123 = vpop.f32.mrb[0].mxu0
        %v1124 = vadd.f32 %v844, %v1123
        %1125 = vmatprep.mubr.f32.mxu0 %v648
        %1126 = vmatmul.mubr.f32.gmra.mrb[0].mxu0 %v647
        %v1127 = vpop.f32.mrb[0].mxu0
        %v1128 = vadd.f32 %v840, %v1127
        %v1129 = vpop.f32.mrb[0].mxu0
        %v1130 = vadd.f32 %v844, %v1129
        %1131 = vmatprep.mubr.f32.mxu0 %v650
        %1132 = vmatmul.mubr.f32.gmra.mrb[0].mxu0 %v649
        %v1133 = vpop.f32.mrb[0].mxu0
        %v1134 = vadd.f32 %v840, %v1133
        %v1135 = vpop.f32.mrb[0].mxu0
        %v1136 = vadd.f32 %v844, %v1135
        %1137 = vmatprep.mubr.f32.mxu0 %v652
        %1138 = vmatmul.mubr.f32.gmra.mrb[0].mxu0 %v651
        %v1139 = vpop.f32.mrb[0].mxu0
        %v1140 = vadd.f32 %v840, %v1139
        %v1141 = vpop.f32.mrb[0].mxu0
        %v1142 = vadd.f32 %v844, %v1141
        %1143 = vmatprep.mubr.f32.mxu0 %v654
        %1144 = vmatmul.mubr.f32.gmra.mrb[0].mxu0 %v653
        %v1145 = vpop.f32.mrb[0].mxu0
        %v1146 = vadd.f32 %v840, %v1145
        %v1147 = vpop.f32.mrb[0].mxu0
        %v1148 = vadd.f32 %v844, %v1147
        %1149 = vmatprep.mubr.f32.mxu0 %v656
        %1150 = vmatmul.mubr.f32.gmra.mrb[0].mxu0 %v655
        %v1151 = vpop.f32.mrb[0].mxu0
        %v1152 = vadd.f32 %v840, %v1151
        %v1153 = vpop.f32.mrb[0].mxu0
        %v1154 = vadd.f32 %v844, %v1153
        %1155 = vmatprep.mubr.f32.mxu0 %v658
        %1156 = vmatmul.mubr.f32.gmra.mrb[0].mxu0 %v657
        %v1157 = vpop.f32.mrb[0].mxu0
        %v1158 = vadd.f32 %v840, %v1157
        %v1159 = vpop.f32.mrb[0].mxu0
        %v1160 = vadd.f32 %v844, %v1159
        %1161 = vmatprep.mubr.f32.mxu0 %v660
        %1162 = vmatmul.mubr.f32.gmra.mrb[0].mxu0 %v659
        %v1163 = vpop.f32.mrb[0].mxu0
        %v1164 = vadd.f32 %v840, %v1163
        %v1165 = vpop.f32.mrb[0].mxu0
        %v1166 = vadd.f32 %v844, %v1165
        %1167 = vmatprep.mubr.f32.mxu0 %v662
        %1168 = vmatmul.mubr.f32.gmra.mrb[0].mxu0 %v661
        %v1169 = vpop.f32.mrb[0].mxu0
        %v1170 = vadd.f32 %v840, %v1169
        %v1171 = vpop.f32.mrb[0].mxu0
        %v1172 = vadd.f32 %v844, %v1171
        %1173 = vmatprep.mubr.f32.mxu0 %v664
        %1174 = vmatmul.mubr.f32.gmra.mrb[0].mxu0 %v663
        %v1175 = vpop.f32.mrb[0].mxu0
        %v1176 = vadd.f32 %v840, %v1175
        %v1177 = vpop.f32.mrb[0].mxu0
        %v1178 = vadd.f32 %v844, %v1177
        %1179 = vmatprep.mubr.f32.mxu0 %v666
        %1180 = vmatmul.mubr.f32.gmra.mrb[0].mxu0 %v665
        %v1181 = vpop.f32.mrb[0].mxu0
        %v1182 = vadd.f32 %v840, %v1181
        %v1183 = vpop.f32.mrb[0].mxu0
        %v1184 = vadd.f32 %v844, %v1183
        %1185 = vmatprep.mubr.f32.mxu0 %v668
        %1186 = vmatmul.mubr.f32.gmra.mrb[0].mxu0 %v667
        %v1187 = vpop.f32.mrb[0].mxu0
        %v1188 = vadd.f32 %v840, %v1187
        %v1189 = vpop.f32.mrb[0].mxu0
        %v1190 = vadd.f32 %v844, %v1189
        %1191 = vmatprep.mubr.f32.mxu0 %v670
        %1192 = vmatmul.mubr.f32.gmra.mrb[0].mxu0 %v669
        %v1193 = vpop.f32.mrb[0].mxu0
        %v1194 = vadd.f32 %v840, %v1193
        %v1195 = vpop.f32.mrb[0].mxu0
        %v1196 = vadd.f32 %v844, %v1195
        %1197 = vmatprep.mubr.f32.mxu0 %v672
        %1198 = vmatmul.mubr.f32.gmra.mrb[0].mxu0 %v671
        %v1199 = vpop.f32.mrb[0].mxu0
        %v1200 = vadd.f32 %v840, %v1199
        %v1201 = vpop.f32.mrb[0].mxu0
        %v1202 = vadd.f32 %v844, %v1201
        %1203 = vmatprep.mubr.f32.mxu0 %v674
        %1204 = vmatmul.mubr.f32.gmra.mrb[0].mxu0 %v673
        %v1205 = vpop.f32.mrb[0].mxu0
        %v1206 = vadd.f32 %v840, %v1205
        %v1207 = vpop.f32.mrb[0].mxu0
        %v1208 = vadd.f32 %v844, %v1207
        %1209 = vmatprep.mubr.f32.mxu0 %v676
        %1210 = vmatmul.mubr.f32.gmra.mrb[0].mxu0 %v675
        %v1211 = vpop.f32.mrb[0].mxu0
        %v1212 = vadd.f32 %v840, %v1211
        %v1213 = vpop.f32.mrb[0].mxu0
        %v1214 = vadd.f32 %v844, %v1213
        %1215 = vmatprep.mubr.f32.mxu0 %v678
        %1216 = vmatmul.mubr.f32.gmra.mrb[0].mxu0 %v677
        %v1217 = vpop.f32.mrb[0].mxu0
        %v1218 = vadd.f32 %v840, %v1217
        %v1219 = vpop.f32.mrb[0].mxu0
        %v1220 = vadd.f32 %v844, %v1219
        %1221 = vmatprep.mubr.f32.mxu0 %v680
        %1222 = vmatmul.mubr.f32.gmra.mrb[0].mxu0 %v679
        %v1223 = vpop.f32.mrb[0].mxu0
        %v1224 = vadd.f32 %v840, %v1223
        %v1225 = vpop.f32.mrb[0].mxu0
        %v1226 = vadd.f32 %v844, %v1225
        %1227 = vmatprep.mubr.f32.mxu0 %v682
        %1228 = vmatmul.mubr.f32.gmra.mrb[0].mxu0 %v681
        %v1229 = vpop.f32.mrb[0].mxu0
        %v1230 = vadd.f32 %v840, %v1229
        %v1231 = vpop.f32.mrb[0].mxu0
        %v1232 = vadd.f32 %v844, %v1231
        %1233 = vmatprep.mubr.f32.mxu0 %v684
        %1234 = vmatmul.mubr.f32.gmra.mrb[0].mxu0 %v683
        %v1235 = vpop.f32.mrb[0].mxu0
        %v1236 = vadd.f32 %v840, %v1235
        %v1237 = vpop.f32.mrb[0].mxu0
        %v1238 = vadd.f32 %v844, %v1237
        %1239 = vmatprep.mubr.f32.mxu0 %v686
        %1240 = vmatmul.mubr.f32.gmra.mrb[0].mxu0 %v685
        %v1241 = vpop.f32.mrb[0].mxu0
        %v1242 = vadd.f32 %v840, %v1241
        %v1243 = vpop.f32.mrb[0].mxu0
        %v1244 = vadd.f32 %v844, %v1243
        %1245 = vmatprep.mubr.f32.mxu0 %v688
        %1246 = vmatmul.mubr.f32.gmra.mrb[0].mxu0 %v687
        %v1247 = vpop.f32.mrb[0].mxu0
        %v1248 = vadd.f32 %v840, %v1247
        %v1249 = vpop.f32.mrb[0].mxu0
        %v1250 = vadd.f32 %v844, %v1249
        %1251 = vmatprep.mubr.f32.mxu0 %v690
        %1252 = vmatmul.mubr.f32.gmra.mrb[0].mxu0 %v689
        %v1253 = vpop.f32.mrb[0].mxu0
        %v1254 = vadd.f32 %v840, %v1253
        %v1255 = vpop.f32.mrb[0].mxu0
        %v1256 = vadd.f32 %v844, %v1255
        %1257 = vmatprep.mubr.f32.mxu0 %v692
        %1258 = vmatmul.mubr.f32.gmra.mrb[0].mxu0 %v691
        %v1259 = vpop.f32.mrb[0].mxu0
        %v1260 = vadd.f32 %v840, %v1259
        %v1261 = vpop.f32.mrb[0].mxu0
        %v1262 = vadd.f32 %v844, %v1261
        %1263 = vmatprep.mubr.f32.mxu0 %v694
        %1264 = vmatmul.mubr.f32.gmra.mrb[0].mxu0 %v693
        %v1265 = vpop.f32.mrb[0].mxu0
        %v1266 = vadd.f32 %v840, %v1265
        %v1267 = vpop.f32.mrb[0].mxu0
        %v1268 = vadd.f32 %v844, %v1267
        %1269 = vmatprep.mubr.f32.mxu0 %v696
        %1270 = vmatmul.mubr.f32.gmra.mrb[0].mxu0 %v695
        %v1271 = vpop.f32.mrb[0].mxu0
        %v1272 = vadd.f32 %v840, %v1271
        %v1273 = vpop.f32.mrb[0].mxu0
        %v1274 = vadd.f32 %v844, %v1273
        %1275 = vmatprep.mubr.f32.mxu0 %v698
        %1276 = vmatmul.mubr.f32.gmra.mrb[0].mxu0 %v697
        %v1277 = vpop.f32.mrb[0].mxu0
        %v1278 = vadd.f32 %v840, %v1277
        %v1279 = vpop.f32.mrb[0].mxu0
        %v1280 = vadd.f32 %v844, %v1279
        %1281 = vmatprep.mubr.f32.mxu0 %v700
        %1282 = vmatmul.mubr.f32.gmra.mrb[0].mxu0 %v699
        %v1283 = vpop.f32.mrb[0].mxu0
        %v1284 = vadd.f32 %v840, %v1283
        %v1285 = vpop.f32.mrb[0].mxu0
        %v1286 = vadd.f32 %v844, %v1285
        %1287 = vmatprep.mubr.f32.mxu0 %v702
        %1288 = vmatmul.mubr.f32.gmra.mrb[0].mxu0 %v701
        %v1289 = vpop.f32.mrb[0].mxu0
        %v1290 = vadd.f32 %v840, %v1289
        %v1291 = vpop.f32.mrb[0].mxu0
        %v1292 = vadd.f32 %v844, %v1291
        %1293 = vmatprep.mubr.f32.mxu0 %v704
        %1294 = vmatmul.mubr.f32.gmra.mrb[0].mxu0 %v703
        %v1295 = vpop.f32.mrb[0].mxu0
        %v1296 = vadd.f32 %v840, %v1295
        %v1297 = vpop.f32.mrb[0].mxu0
        %v1298 = vadd.f32 %v844, %v1297
        %1299 = vmatprep.mubr.f32.mxu0 %v706
        %1300 = vmatmul.mubr.f32.gmra.mrb[0].mxu0 %v705
        %v1301 = vpop.f32.mrb[0].mxu0
        %v1302 = vadd.f32 %v840, %v1301
        %v1303 = vpop.f32.mrb[0].mxu0
        %v1304 = vadd.f32 %v844, %v1303
        %1305 = vdwg.mxu0
        %1306 = vmatprep.subr.mxu0 %v710
        %1307 = vmatpush1.msra.mxu0 %v709
        %1308 = vmatprep.subr.mxu0 %v714
        %1309 = vmatpush1.msra.mxu0 %v713
        %1310 = vmatprep.subr.mxu0 %v718
        %1311 = vmatpush1.msra.mxu0 %v717
        %1312 = vmatprep.subr.mxu0 %v722
        %1313 = vmatpush1.msra.mxu0 %v721
        %1314 = vmatprep.subr.mxu0 %v726
        %1315 = vmatpush1.msra.mxu0 %v725
        %1316 = vmatprep.subr.mxu0 %v730
        %1317 = vmatpush1.msra.mxu0 %v729
        %1318 = vmatprep.subr.mxu0 %v734
        %1319 = vmatpush1.msra.mxu0 %v733
        %1320 = vmatprep.subr.mxu0 %v738
        %1321 = vmatpush1.msra.mxu0 %v737
        %1322 = vmatprep.subr.mxu0 %v742
        %1323 = vmatpush1.msra.mxu0 %v741
        %1324 = vmatprep.subr.mxu0 %v746
        %1325 = vmatpush1.msra.mxu0 %v745
        %1326 = vmatprep.subr.mxu0 %v750
        %1327 = vmatpush1.msra.mxu0 %v749
        %1328 = vmatprep.subr.mxu0 %v754
        %1329 = vmatpush1.msra.mxu0 %v753
        %1330 = vmatprep.subr.mxu0 %v758
        %1331 = vmatpush1.msra.mxu0 %v757
        %1332 = vmatprep.subr.mxu0 %v762
        %1333 = vmatpush1.msra.mxu0 %v761
        %1334 = vmatprep.subr.mxu0 %v766
        %1335 = vmatpush1.msra.mxu0 %v765
        %1336 = vmatprep.subr.mxu0 %v770
        %1337 = vmatpush1.msra.mxu0 %v769
        %1338 = vmatprep.subr.mxu0 %v774
        %1339 = vmatpush1.msra.mxu0 %v773
        %1340 = vmatprep.subr.mxu0 %v778
        %1341 = vmatpush1.msra.mxu0 %v777
        %1342 = vmatprep.subr.mxu0 %v782
        %1343 = vmatpush1.msra.mxu0 %v781
        %1344 = vmatprep.subr.mxu0 %v786
        %1345 = vmatpush1.msra.mxu0 %v785
        %1346 = vmatprep.subr.mxu0 %v790
        %1347 = vmatpush1.msra.mxu0 %v789
        %1348 = vmatprep.subr.mxu0 %v794
        %1349 = vmatpush1.msra.mxu0 %v793
        %1350 = vmatprep.subr.mxu0 %v798
        %1351 = vmatpush1.msra.mxu0 %v797
        %1352 = vmatprep.subr.mxu0 %v802
        %1353 = vmatpush1.msra.mxu0 %v801
        %1354 = vmatprep.subr.mxu0 %v806
        %1355 = vmatpush1.msra.mxu0 %v805
        %1356 = vmatprep.subr.mxu0 %v810
        %1357 = vmatpush1.msra.mxu0 %v809
        %1358 = vmatprep.subr.mxu0 %v814
        %1359 = vmatpush1.msra.mxu0 %v813
        %1360 = vmatprep.subr.mxu0 %v818
        %1361 = vmatpush1.msra.mxu0 %v817
        %1362 = vmatprep.subr.mxu0 %v822
        %1363 = vmatpush1.msra.mxu0 %v821
        %1364 = vmatprep.subr.mxu0 %v826
        %1365 = vmatpush1.msra.mxu0 %v825
        %1366 = vmatprep.subr.mxu0 %v830
        %1367 = vmatpush1.msra.mxu0 %v829
        %1368 = vmatprep.subr.mxu0 %v834
        %1369 = vmatpush1.msra.mxu0 %v833
        %1370 = vmatprep.mubr.f32.mxu0 %v580
        %1371 = vmatmul.mubr.f32.gmra.mrb[0].mxu0 %v579
        %v1372 = vpop.f32.mrb[0].mxu0
        %v1373 = vadd.f32 %v848, %v1372
        %v1374 = vpop.f32.mrb[0].mxu0
        %v1375 = vadd.f32 %v852, %v1374
        %1376 = vmatprep.mubr.f32.mxu0 %v582
        %1377 = vmatmul.mubr.f32.gmra.mrb[0].mxu0 %v581
        %v1378 = vpop.f32.mrb[0].mxu0
        %v1379 = vadd.f32 %v848, %v1378
        %v1380 = vpop.f32.mrb[0].mxu0
        %v1381 = vadd.f32 %v852, %v1380
        %1382 = vmatprep.mubr.f32.mxu0 %v584
        %1383 = vmatmul.mubr.f32.gmra.mrb[0].mxu0 %v583
        %v1384 = vpop.f32.mrb[0].mxu0
        %v1385 = vadd.f32 %v848, %v1384
        %v1386 = vpop.f32.mrb[0].mxu0
        %v1387 = vadd.f32 %v852, %v1386
        %1388 = vmatprep.mubr.f32.mxu0 %v586
        %1389 = vmatmul.mubr.f32.gmra.mrb[0].mxu0 %v585
        %v1390 = vpop.f32.mrb[0].mxu0
        %v1391 = vadd.f32 %v848, %v1390
        %v1392 = vpop.f32.mrb[0].mxu0
        %v1393 = vadd.f32 %v852, %v1392
        %1394 = vmatprep.mubr.f32.mxu0 %v588
        %1395 = vmatmul.mubr.f32.gmra.mrb[0].mxu0 %v587
        %v1396 = vpop.f32.mrb[0].mxu0
        %v1397 = vadd.f32 %v848, %v1396
        %v1398 = vpop.f32.mrb[0].mxu0
        %v1399 = vadd.f32 %v852, %v1398
        %1400 = vmatprep.mubr.f32.mxu0 %v590
        %1401 = vmatmul.mubr.f32.gmra.mrb[0].mxu0 %v589
        %v1402 = vpop.f32.mrb[0].mxu0
        %v1403 = vadd.f32 %v848, %v1402
        %v1404 = vpop.f32.mrb[0].mxu0
        %v1405 = vadd.f32 %v852, %v1404
        %1406 = vmatprep.mubr.f32.mxu0 %v592
        %1407 = vmatmul.mubr.f32.gmra.mrb[0].mxu0 %v591
        %v1408 = vpop.f32.mrb[0].mxu0
        %v1409 = vadd.f32 %v848, %v1408
        %v1410 = vpop.f32.mrb[0].mxu0
        %v1411 = vadd.f32 %v852, %v1410
        %1412 = vmatprep.mubr.f32.mxu0 %v594
        %1413 = vmatmul.mubr.f32.gmra.mrb[0].mxu0 %v593
        %v1414 = vpop.f32.mrb[0].mxu0
        %v1415 = vadd.f32 %v848, %v1414
        %v1416 = vpop.f32.mrb[0].mxu0
        %v1417 = vadd.f32 %v852, %v1416
        %1418 = vmatprep.mubr.f32.mxu0 %v596
        %1419 = vmatmul.mubr.f32.gmra.mrb[0].mxu0 %v595
        %v1420 = vpop.f32.mrb[0].mxu0
        %v1421 = vadd.f32 %v848, %v1420
        %v1422 = vpop.f32.mrb[0].mxu0
        %v1423 = vadd.f32 %v852, %v1422
        %1424 = vmatprep.mubr.f32.mxu0 %v598
        %1425 = vmatmul.mubr.f32.gmra.mrb[0].mxu0 %v597
        %v1426 = vpop.f32.mrb[0].mxu0
        %v1427 = vadd.f32 %v848, %v1426
        %v1428 = vpop.f32.mrb[0].mxu0
        %v1429 = vadd.f32 %v852, %v1428
        %1430 = vmatprep.mubr.f32.mxu0 %v600
        %1431 = vmatmul.mubr.f32.gmra.mrb[0].mxu0 %v599
        %v1432 = vpop.f32.mrb[0].mxu0
        %v1433 = vadd.f32 %v848, %v1432
        %v1434 = vpop.f32.mrb[0].mxu0
        %v1435 = vadd.f32 %v852, %v1434
        %1436 = vmatprep.mubr.f32.mxu0 %v602
        %1437 = vmatmul.mubr.f32.gmra.mrb[0].mxu0 %v601
        %v1438 = vpop.f32.mrb[0].mxu0
        %v1439 = vadd.f32 %v848, %v1438
        %v1440 = vpop.f32.mrb[0].mxu0
        %v1441 = vadd.f32 %v852, %v1440
        %1442 = vmatprep.mubr.f32.mxu0 %v604
        %1443 = vmatmul.mubr.f32.gmra.mrb[0].mxu0 %v603
        %v1444 = vpop.f32.mrb[0].mxu0
        %v1445 = vadd.f32 %v848, %v1444
        %v1446 = vpop.f32.mrb[0].mxu0
        %v1447 = vadd.f32 %v852, %v1446
        %1448 = vmatprep.mubr.f32.mxu0 %v606
        %1449 = vmatmul.mubr.f32.gmra.mrb[0].mxu0 %v605
        %v1450 = vpop.f32.mrb[0].mxu0
        %v1451 = vadd.f32 %v848, %v1450
        %v1452 = vpop.f32.mrb[0].mxu0
        %v1453 = vadd.f32 %v852, %v1452
        %1454 = vmatprep.mubr.f32.mxu0 %v608
        %1455 = vmatmul.mubr.f32.gmra.mrb[0].mxu0 %v607
        %v1456 = vpop.f32.mrb[0].mxu0
        %v1457 = vadd.f32 %v848, %v1456
        %v1458 = vpop.f32.mrb[0].mxu0
        %v1459 = vadd.f32 %v852, %v1458
        %1460 = vmatprep.mubr.f32.mxu0 %v610
        %1461 = vmatmul.mubr.f32.gmra.mrb[0].mxu0 %v609
        %v1462 = vpop.f32.mrb[0].mxu0
        %v1463 = vadd.f32 %v848, %v1462
        %v1464 = vpop.f32.mrb[0].mxu0
        %v1465 = vadd.f32 %v852, %v1464
        %1466 = vmatprep.mubr.f32.mxu0 %v612
        %1467 = vmatmul.mubr.f32.gmra.mrb[0].mxu0 %v611
        %v1468 = vpop.f32.mrb[0].mxu0
        %v1469 = vadd.f32 %v848, %v1468
        %v1470 = vpop.f32.mrb[0].mxu0
        %v1471 = vadd.f32 %v852, %v1470
        %1472 = vmatprep.mubr.f32.mxu0 %v614
        %1473 = vmatmul.mubr.f32.gmra.mrb[0].mxu0 %v613
        %v1474 = vpop.f32.mrb[0].mxu0
        %v1475 = vadd.f32 %v848, %v1474
        %v1476 = vpop.f32.mrb[0].mxu0
        %v1477 = vadd.f32 %v852, %v1476
        %1478 = vmatprep.mubr.f32.mxu0 %v616
        %1479 = vmatmul.mubr.f32.gmra.mrb[0].mxu0 %v615
        %v1480 = vpop.f32.mrb[0].mxu0
        %v1481 = vadd.f32 %v848, %v1480
        %v1482 = vpop.f32.mrb[0].mxu0
        %v1483 = vadd.f32 %v852, %v1482
        %1484 = vmatprep.mubr.f32.mxu0 %v618
        %1485 = vmatmul.mubr.f32.gmra.mrb[0].mxu0 %v617
        %v1486 = vpop.f32.mrb[0].mxu0
        %v1487 = vadd.f32 %v848, %v1486
        %v1488 = vpop.f32.mrb[0].mxu0
        %v1489 = vadd.f32 %v852, %v1488
        %1490 = vmatprep.mubr.f32.mxu0 %v620
        %1491 = vmatmul.mubr.f32.gmra.mrb[0].mxu0 %v619
        %v1492 = vpop.f32.mrb[0].mxu0
        %v1493 = vadd.f32 %v848, %v1492
        %v1494 = vpop.f32.mrb[0].mxu0
        %v1495 = vadd.f32 %v852, %v1494
        %1496 = vmatprep.mubr.f32.mxu0 %v622
        %1497 = vmatmul.mubr.f32.gmra.mrb[0].mxu0 %v621
        %v1498 = vpop.f32.mrb[0].mxu0
        %v1499 = vadd.f32 %v848, %v1498
        %v1500 = vpop.f32.mrb[0].mxu0
        %v1501 = vadd.f32 %v852, %v1500
        %1502 = vmatprep.mubr.f32.mxu0 %v624
        %1503 = vmatmul.mubr.f32.gmra.mrb[0].mxu0 %v623
        %v1504 = vpop.f32.mrb[0].mxu0
        %v1505 = vadd.f32 %v848, %v1504
        %v1506 = vpop.f32.mrb[0].mxu0
        %v1507 = vadd.f32 %v852, %v1506
        %1508 = vmatprep.mubr.f32.mxu0 %v626
        %1509 = vmatmul.mubr.f32.gmra.mrb[0].mxu0 %v625
        %v1510 = vpop.f32.mrb[0].mxu0
        %v1511 = vadd.f32 %v848, %v1510
        %v1512 = vpop.f32.mrb[0].mxu0
        %v1513 = vadd.f32 %v852, %v1512
        %1514 = vmatprep.mubr.f32.mxu0 %v628
        %1515 = vmatmul.mubr.f32.gmra.mrb[0].mxu0 %v627
        %v1516 = vpop.f32.mrb[0].mxu0
        %v1517 = vadd.f32 %v848, %v1516
        %v1518 = vpop.f32.mrb[0].mxu0
        %v1519 = vadd.f32 %v852, %v1518
        %1520 = vmatprep.mubr.f32.mxu0 %v630
        %1521 = vmatmul.mubr.f32.gmra.mrb[0].mxu0 %v629
        %v1522 = vpop.f32.mrb[0].mxu0
        %v1523 = vadd.f32 %v848, %v1522
        %v1524 = vpop.f32.mrb[0].mxu0
        %v1525 = vadd.f32 %v852, %v1524
        %1526 = vmatprep.mubr.f32.mxu0 %v632
        %1527 = vmatmul.mubr.f32.gmra.mrb[0].mxu0 %v631
        %v1528 = vpop.f32.mrb[0].mxu0
        %v1529 = vadd.f32 %v848, %v1528
        %v1530 = vpop.f32.mrb[0].mxu0
        %v1531 = vadd.f32 %v852, %v1530
        %1532 = vmatprep.mubr.f32.mxu0 %v634
        %1533 = vmatmul.mubr.f32.gmra.mrb[0].mxu0 %v633
        %v1534 = vpop.f32.mrb[0].mxu0
        %v1535 = vadd.f32 %v848, %v1534
        %v1536 = vpop.f32.mrb[0].mxu0
        %v1537 = vadd.f32 %v852, %v1536
        %1538 = vmatprep.mubr.f32.mxu0 %v636
        %1539 = vmatmul.mubr.f32.gmra.mrb[0].mxu0 %v635
        %v1540 = vpop.f32.mrb[0].mxu0
        %v1541 = vadd.f32 %v848, %v1540
        %v1542 = vpop.f32.mrb[0].mxu0
        %v1543 = vadd.f32 %v852, %v1542
        %1544 = vmatprep.mubr.f32.mxu0 %v638
        %1545 = vmatmul.mubr.f32.gmra.mrb[0].mxu0 %v637
        %v1546 = vpop.f32.mrb[0].mxu0
        %v1547 = vadd.f32 %v848, %v1546
        %v1548 = vpop.f32.mrb[0].mxu0
        %v1549 = vadd.f32 %v852, %v1548
        %1550 = vmatprep.mubr.f32.mxu0 %v640
        %1551 = vmatmul.mubr.f32.gmra.mrb[0].mxu0 %v639
        %v1552 = vpop.f32.mrb[0].mxu0
        %v1553 = vadd.f32 %v848, %v1552
        %v1554 = vpop.f32.mrb[0].mxu0
        %v1555 = vadd.f32 %v852, %v1554
        %1556 = vmatprep.mubr.f32.mxu0 %v642
        %1557 = vmatmul.mubr.f32.gmra.mrb[0].mxu0 %v641
        %v1558 = vpop.f32.mrb[0].mxu0
        %v1559 = vadd.f32 %v848, %v1558
        %v1560 = vpop.f32.mrb[0].mxu0
        %v1561 = vadd.f32 %v852, %v1560
        %1562 = vmatprep.mubr.f32.mxu0 %v644
        %1563 = vmatmul.mubr.f32.gmra.mrb[0].mxu0 %v643
        %v1564 = vpop.f32.mrb[0].mxu0
        %v1565 = vadd.f32 %v848, %v1564
        %v1566 = vpop.f32.mrb[0].mxu0
        %v1567 = vadd.f32 %v852, %v1566
        %1568 = vmatprep.mubr.f32.mxu0 %v646
        %1569 = vmatmul.mubr.f32.gmra.mrb[0].mxu0 %v645
        %v1570 = vpop.f32.mrb[0].mxu0
        %v1571 = vadd.f32 %v848, %v1570
        %v1572 = vpop.f32.mrb[0].mxu0
        %v1573 = vadd.f32 %v852, %v1572
        %1574 = vmatprep.mubr.f32.mxu0 %v648
        %1575 = vmatmul.mubr.f32.gmra.mrb[0].mxu0 %v647
        %v1576 = vpop.f32.mrb[0].mxu0
        %v1577 = vadd.f32 %v848, %v1576
        %v1578 = vpop.f32.mrb[0].mxu0
        %v1579 = vadd.f32 %v852, %v1578
        %1580 = vmatprep.mubr.f32.mxu0 %v650
        %1581 = vmatmul.mubr.f32.gmra.mrb[0].mxu0 %v649
        %v1582 = vpop.f32.mrb[0].mxu0
        %v1583 = vadd.f32 %v848, %v1582
        %v1584 = vpop.f32.mrb[0].mxu0
        %v1585 = vadd.f32 %v852, %v1584
        %1586 = vmatprep.mubr.f32.mxu0 %v652
        %1587 = vmatmul.mubr.f32.gmra.mrb[0].mxu0 %v651
        %v1588 = vpop.f32.mrb[0].mxu0
        %v1589 = vadd.f32 %v848, %v1588
        %v1590 = vpop.f32.mrb[0].mxu0
        %v1591 = vadd.f32 %v852, %v1590
        %1592 = vmatprep.mubr.f32.mxu0 %v654
        %1593 = vmatmul.mubr.f32.gmra.mrb[0].mxu0 %v653
        %v1594 = vpop.f32.mrb[0].mxu0
        %v1595 = vadd.f32 %v848, %v1594
        %v1596 = vpop.f32.mrb[0].mxu0
        %v1597 = vadd.f32 %v852, %v1596
        %1598 = vmatprep.mubr.f32.mxu0 %v656
        %1599 = vmatmul.mubr.f32.gmra.mrb[0].mxu0 %v655
        %v1600 = vpop.f32.mrb[0].mxu0
        %v1601 = vadd.f32 %v848, %v1600
        %v1602 = vpop.f32.mrb[0].mxu0
        %v1603 = vadd.f32 %v852, %v1602
        %1604 = vmatprep.mubr.f32.mxu0 %v658
        %1605 = vmatmul.mubr.f32.gmra.mrb[0].mxu0 %v657
        %v1606 = vpop.f32.mrb[0].mxu0
        %v1607 = vadd.f32 %v848, %v1606
        %v1608 = vpop.f32.mrb[0].mxu0
        %v1609 = vadd.f32 %v852, %v1608
        %1610 = vmatprep.mubr.f32.mxu0 %v660
        %1611 = vmatmul.mubr.f32.gmra.mrb[0].mxu0 %v659
        %v1612 = vpop.f32.mrb[0].mxu0
        %v1613 = vadd.f32 %v848, %v1612
        %v1614 = vpop.f32.mrb[0].mxu0
        %v1615 = vadd.f32 %v852, %v1614
        %1616 = vmatprep.mubr.f32.mxu0 %v662
        %1617 = vmatmul.mubr.f32.gmra.mrb[0].mxu0 %v661
        %v1618 = vpop.f32.mrb[0].mxu0
        %v1619 = vadd.f32 %v848, %v1618
        %v1620 = vpop.f32.mrb[0].mxu0
        %v1621 = vadd.f32 %v852, %v1620
        %1622 = vmatprep.mubr.f32.mxu0 %v664
        %1623 = vmatmul.mubr.f32.gmra.mrb[0].mxu0 %v663
        %v1624 = vpop.f32.mrb[0].mxu0
        %v1625 = vadd.f32 %v848, %v1624
        %v1626 = vpop.f32.mrb[0].mxu0
        %v1627 = vadd.f32 %v852, %v1626
        %1628 = vmatprep.mubr.f32.mxu0 %v666
        %1629 = vmatmul.mubr.f32.gmra.mrb[0].mxu0 %v665
        %v1630 = vpop.f32.mrb[0].mxu0
        %v1631 = vadd.f32 %v848, %v1630
        %v1632 = vpop.f32.mrb[0].mxu0
        %v1633 = vadd.f32 %v852, %v1632
        %1634 = vmatprep.mubr.f32.mxu0 %v668
        %1635 = vmatmul.mubr.f32.gmra.mrb[0].mxu0 %v667
        %v1636 = vpop.f32.mrb[0].mxu0
        %v1637 = vadd.f32 %v848, %v1636
        %v1638 = vpop.f32.mrb[0].mxu0
        %v1639 = vadd.f32 %v852, %v1638
        %1640 = vmatprep.mubr.f32.mxu0 %v670
        %1641 = vmatmul.mubr.f32.gmra.mrb[0].mxu0 %v669
        %v1642 = vpop.f32.mrb[0].mxu0
        %v1643 = vadd.f32 %v848, %v1642
        %v1644 = vpop.f32.mrb[0].mxu0
        %v1645 = vadd.f32 %v852, %v1644
        %1646 = vmatprep.mubr.f32.mxu0 %v672
        %1647 = vmatmul.mubr.f32.gmra.mrb[0].mxu0 %v671
        %v1648 = vpop.f32.mrb[0].mxu0
        %v1649 = vadd.f32 %v848, %v1648
        %v1650 = vpop.f32.mrb[0].mxu0
        %v1651 = vadd.f32 %v852, %v1650
        %1652 = vmatprep.mubr.f32.mxu0 %v674
        %1653 = vmatmul.mubr.f32.gmra.mrb[0].mxu0 %v673
        %v1654 = vpop.f32.mrb[0].mxu0
        %v1655 = vadd.f32 %v848, %v1654
        %v1656 = vpop.f32.mrb[0].mxu0
        %v1657 = vadd.f32 %v852, %v1656
        %1658 = vmatprep.mubr.f32.mxu0 %v676
        %1659 = vmatmul.mubr.f32.gmra.mrb[0].mxu0 %v675
        %v1660 = vpop.f32.mrb[0].mxu0
        %v1661 = vadd.f32 %v848, %v1660
        %v1662 = vpop.f32.mrb[0].mxu0
        %v1663 = vadd.f32 %v852, %v1662
        %1664 = vmatprep.mubr.f32.mxu0 %v678
        %1665 = vmatmul.mubr.f32.gmra.mrb[0].mxu0 %v677
        %v1666 = vpop.f32.mrb[0].mxu0
        %v1667 = vadd.f32 %v848, %v1666
        %v1668 = vpop.f32.mrb[0].mxu0
        %v1669 = vadd.f32 %v852, %v1668
        %1670 = vmatprep.mubr.f32.mxu0 %v680
        %1671 = vmatmul.mubr.f32.gmra.mrb[0].mxu0 %v679
        %v1672 = vpop.f32.mrb[0].mxu0
        %v1673 = vadd.f32 %v848, %v1672
        %v1674 = vpop.f32.mrb[0].mxu0
        %v1675 = vadd.f32 %v852, %v1674
        %1676 = vmatprep.mubr.f32.mxu0 %v682
        %1677 = vmatmul.mubr.f32.gmra.mrb[0].mxu0 %v681
        %v1678 = vpop.f32.mrb[0].mxu0
        %v1679 = vadd.f32 %v848, %v1678
        %v1680 = vpop.f32.mrb[0].mxu0
        %v1681 = vadd.f32 %v852, %v1680
        %1682 = vmatprep.mubr.f32.mxu0 %v684
        %1683 = vmatmul.mubr.f32.gmra.mrb[0].mxu0 %v683
        %v1684 = vpop.f32.mrb[0].mxu0
        %v1685 = vadd.f32 %v848, %v1684
        %v1686 = vpop.f32.mrb[0].mxu0
        %v1687 = vadd.f32 %v852, %v1686
        %1688 = vmatprep.mubr.f32.mxu0 %v686
        %1689 = vmatmul.mubr.f32.gmra.mrb[0].mxu0 %v685
        %v1690 = vpop.f32.mrb[0].mxu0
        %v1691 = vadd.f32 %v848, %v1690
        %v1692 = vpop.f32.mrb[0].mxu0
        %v1693 = vadd.f32 %v852, %v1692
        %1694 = vmatprep.mubr.f32.mxu0 %v688
        %1695 = vmatmul.mubr.f32.gmra.mrb[0].mxu0 %v687
        %v1696 = vpop.f32.mrb[0].mxu0
        %v1697 = vadd.f32 %v848, %v1696
        %v1698 = vpop.f32.mrb[0].mxu0
        %v1699 = vadd.f32 %v852, %v1698
        %1700 = vmatprep.mubr.f32.mxu0 %v690
        %1701 = vmatmul.mubr.f32.gmra.mrb[0].mxu0 %v689
        %v1702 = vpop.f32.mrb[0].mxu0
        %v1703 = vadd.f32 %v848, %v1702
        %v1704 = vpop.f32.mrb[0].mxu0
        %v1705 = vadd.f32 %v852, %v1704
        %1706 = vmatprep.mubr.f32.mxu0 %v692
        %1707 = vmatmul.mubr.f32.gmra.mrb[0].mxu0 %v691
        %v1708 = vpop.f32.mrb[0].mxu0
        %v1709 = vadd.f32 %v848, %v1708
        %v1710 = vpop.f32.mrb[0].mxu0
        %v1711 = vadd.f32 %v852, %v1710
        %1712 = vmatprep.mubr.f32.mxu0 %v694
        %1713 = vmatmul.mubr.f32.gmra.mrb[0].mxu0 %v693
        %v1714 = vpop.f32.mrb[0].mxu0
        %v1715 = vadd.f32 %v848, %v1714
        %v1716 = vpop.f32.mrb[0].mxu0
        %v1717 = vadd.f32 %v852, %v1716
        %1718 = vmatprep.mubr.f32.mxu0 %v696
        %1719 = vmatmul.mubr.f32.gmra.mrb[0].mxu0 %v695
        %v1720 = vpop.f32.mrb[0].mxu0
        %v1721 = vadd.f32 %v848, %v1720
        %v1722 = vpop.f32.mrb[0].mxu0
        %v1723 = vadd.f32 %v852, %v1722
        %1724 = vmatprep.mubr.f32.mxu0 %v698
        %1725 = vmatmul.mubr.f32.gmra.mrb[0].mxu0 %v697
        %v1726 = vpop.f32.mrb[0].mxu0
        %v1727 = vadd.f32 %v848, %v1726
        %v1728 = vpop.f32.mrb[0].mxu0
        %v1729 = vadd.f32 %v852, %v1728
        %1730 = vmatprep.mubr.f32.mxu0 %v700
        %1731 = vmatmul.mubr.f32.gmra.mrb[0].mxu0 %v699
        %v1732 = vpop.f32.mrb[0].mxu0
        %v1733 = vadd.f32 %v848, %v1732
        %v1734 = vpop.f32.mrb[0].mxu0
        %v1735 = vadd.f32 %v852, %v1734
        %1736 = vmatprep.mubr.f32.mxu0 %v702
        %1737 = vmatmul.mubr.f32.gmra.mrb[0].mxu0 %v701
        %v1738 = vpop.f32.mrb[0].mxu0
        %v1739 = vadd.f32 %v848, %v1738
        %v1740 = vpop.f32.mrb[0].mxu0
        %v1741 = vadd.f32 %v852, %v1740
        %1742 = vmatprep.mubr.f32.mxu0 %v704
        %1743 = vmatmul.mubr.f32.gmra.mrb[0].mxu0 %v703
        %v1744 = vpop.f32.mrb[0].mxu0
        %v1745 = vadd.f32 %v848, %v1744
        %v1746 = vpop.f32.mrb[0].mxu0
        %v1747 = vadd.f32 %v852, %v1746
        %1748 = vmatprep.mubr.f32.mxu0 %v706
        %1749 = vmatmul.mubr.f32.gmra.mrb[0].mxu0 %v705
        %v1750 = vpop.f32.mrb[0].mxu0
        %v1751 = vadd.f32 %v848, %v1750
        %v1752 = vpop.f32.mrb[0].mxu0
        %v1753 = vadd.f32 %v852, %v1752
        %1754 = vdwg.mxu0
        %1755 = vst [vmem:[%s312] sm:$0xff] %v924
        %1756 = vst [vmem:[%s312 + $0x8] sm:$0xff] %v926
        %1757 = vst [vmem:[%s312 + $0x10] sm:$0xff] %v1373
        %1758 = vst [vmem:[%s312 + $0x18] sm:$0xff] %v1375
        %1759 = vst [vmem:[%s312 + $0x20] sm:$0xff] %v930
        %1760 = vst [vmem:[%s312 + $0x28] sm:$0xff] %v932
        %1761 = vst [vmem:[%s312 + $0x30] sm:$0xff] %v1379
        %1762 = vst [vmem:[%s312 + $0x38] sm:$0xff] %v1381
        %1763 = vst [vmem:[%s312 + $0x40] sm:$0xff] %v936
        %1764 = vst [vmem:[%s312 + $0x48] sm:$0xff] %v938
        %1765 = vst [vmem:[%s312 + $0x50] sm:$0xff] %v1385
        %1766 = vst [vmem:[%s312 + $0x58] sm:$0xff] %v1387
        %1767 = vst [vmem:[%s312 + $0x60] sm:$0xff] %v942
        %1768 = vst [vmem:[%s312 + $0x68] sm:$0xff] %v944
        %1769 = vst [vmem:[%s312 + $0x70] sm:$0xff] %v1391
        %1770 = vst [vmem:[%s312 + $0x78] sm:$0xff] %v1393
        %1771 = vst [vmem:[%s312 + $0x80] sm:$0xff] %v948
        %1772 = vst [vmem:[%s312 + $0x88] sm:$0xff] %v950
        %1773 = vst [vmem:[%s312 + $0x90] sm:$0xff] %v1397
        %1774 = vst [vmem:[%s312 + $0x98] sm:$0xff] %v1399
        %1775 = vst [vmem:[%s312 + $0xa0] sm:$0xff] %v954
        %1776 = vst [vmem:[%s312 + $0xa8] sm:$0xff] %v956
        %1777 = vst [vmem:[%s312 + $0xb0] sm:$0xff] %v1403
        %1778 = vst [vmem:[%s312 + $0xb8] sm:$0xff] %v1405
        %1779 = vst [vmem:[%s312 + $0xc0] sm:$0xff] %v960
        %1780 = vst [vmem:[%s312 + $0xc8] sm:$0xff] %v962
        %1781 = vst [vmem:[%s312 + $0xd0] sm:$0xff] %v1409
        %1782 = vst [vmem:[%s312 + $0xd8] sm:$0xff] %v1411
        %1783 = vst [vmem:[%s312 + $0xe0] sm:$0xff] %v966
        %1784 = vst [vmem:[%s312 + $0xe8] sm:$0xff] %v968
        %1785 = vst [vmem:[%s312 + $0xf0] sm:$0xff] %v1415
        %1786 = vst [vmem:[%s312 + $0xf8] sm:$0xff] %v1417
        %1787 = vst [vmem:[%s312 + $0x100] sm:$0xff] %v972
        %1788 = vst [vmem:[%s312 + $0x108] sm:$0xff] %v974
        %1789 = vst [vmem:[%s312 + $0x110] sm:$0xff] %v1421
        %1790 = vst [vmem:[%s312 + $0x118] sm:$0xff] %v1423
        %1791 = vst [vmem:[%s312 + $0x120] sm:$0xff] %v978
        %1792 = vst [vmem:[%s312 + $0x128] sm:$0xff] %v980
        %1793 = vst [vmem:[%s312 + $0x130] sm:$0xff] %v1427
        %1794 = vst [vmem:[%s312 + $0x138] sm:$0xff] %v1429
        %1795 = vst [vmem:[%s312 + $0x140] sm:$0xff] %v984
        %1796 = vst [vmem:[%s312 + $0x148] sm:$0xff] %v986
        %1797 = vst [vmem:[%s312 + $0x150] sm:$0xff] %v1433
        %1798 = vst [vmem:[%s312 + $0x158] sm:$0xff] %v1435
        %1799 = vst [vmem:[%s312 + $0x160] sm:$0xff] %v990
        %1800 = vst [vmem:[%s312 + $0x168] sm:$0xff] %v992
        %1801 = vst [vmem:[%s312 + $0x170] sm:$0xff] %v1439
        %1802 = vst [vmem:[%s312 + $0x178] sm:$0xff] %v1441
        %1803 = vst [vmem:[%s312 + $0x180] sm:$0xff] %v996
        %1804 = vst [vmem:[%s312 + $0x188] sm:$0xff] %v998
        %1805 = vst [vmem:[%s312 + $0x190] sm:$0xff] %v1445
        %1806 = vst [vmem:[%s312 + $0x198] sm:$0xff] %v1447
        %1807 = vst [vmem:[%s312 + $0x1a0] sm:$0xff] %v1002
        %1808 = vst [vmem:[%s312 + $0x1a8] sm:$0xff] %v1004
        %1809 = vst [vmem:[%s312 + $0x1b0] sm:$0xff] %v1451
        %1810 = vst [vmem:[%s312 + $0x1b8] sm:$0xff] %v1453
        %1811 = vst [vmem:[%s312 + $0x1c0] sm:$0xff] %v1008
        %1812 = vst [vmem:[%s312 + $0x1c8] sm:$0xff] %v1010
        %1813 = vst [vmem:[%s312 + $0x1d0] sm:$0xff] %v1457
        %1814 = vst [vmem:[%s312 + $0x1d8] sm:$0xff] %v1459
        %1815 = vst [vmem:[%s312 + $0x1e0] sm:$0xff] %v1014
        %1816 = vst [vmem:[%s312 + $0x1e8] sm:$0xff] %v1016
        %1817 = vst [vmem:[%s312 + $0x1f0] sm:$0xff] %v1463
        %1818 = vst [vmem:[%s312 + $0x1f8] sm:$0xff] %v1465
        %1819 = vst [vmem:[%s312 + $0x200] sm:$0xff] %v1020
        %1820 = vst [vmem:[%s312 + $0x208] sm:$0xff] %v1022
        %1821 = vst [vmem:[%s312 + $0x210] sm:$0xff] %v1469
        %1822 = vst [vmem:[%s312 + $0x218] sm:$0xff] %v1471
        %1823 = vst [vmem:[%s312 + $0x220] sm:$0xff] %v1026
        %1824 = vst [vmem:[%s312 + $0x228] sm:$0xff] %v1028
        %1825 = vst [vmem:[%s312 + $0x230] sm:$0xff] %v1475
        %1826 = vst [vmem:[%s312 + $0x238] sm:$0xff] %v1477
        %1827 = vst [vmem:[%s312 + $0x240] sm:$0xff] %v1032
        %1828 = vst [vmem:[%s312 + $0x248] sm:$0xff] %v1034
        %1829 = vst [vmem:[%s312 + $0x250] sm:$0xff] %v1481
        %1830 = vst [vmem:[%s312 + $0x258] sm:$0xff] %v1483
        %1831 = vst [vmem:[%s312 + $0x260] sm:$0xff] %v1038
        %1832 = vst [vmem:[%s312 + $0x268] sm:$0xff] %v1040
        %1833 = vst [vmem:[%s312 + $0x270] sm:$0xff] %v1487
        %1834 = vst [vmem:[%s312 + $0x278] sm:$0xff] %v1489
        %1835 = vst [vmem:[%s312 + $0x280] sm:$0xff] %v1044
        %1836 = vst [vmem:[%s312 + $0x288] sm:$0xff] %v1046
        %1837 = vst [vmem:[%s312 + $0x290] sm:$0xff] %v1493
        %1838 = vst [vmem:[%s312 + $0x298] sm:$0xff] %v1495
        %1839 = vst [vmem:[%s312 + $0x2a0] sm:$0xff] %v1050
        %1840 = vst [vmem:[%s312 + $0x2a8] sm:$0xff] %v1052
        %1841 = vst [vmem:[%s312 + $0x2b0] sm:$0xff] %v1499
        %1842 = vst [vmem:[%s312 + $0x2b8] sm:$0xff] %v1501
        %1843 = vst [vmem:[%s312 + $0x2c0] sm:$0xff] %v1056
        %1844 = vst [vmem:[%s312 + $0x2c8] sm:$0xff] %v1058
        %1845 = vst [vmem:[%s312 + $0x2d0] sm:$0xff] %v1505
        %1846 = vst [vmem:[%s312 + $0x2d8] sm:$0xff] %v1507
        %1847 = vst [vmem:[%s312 + $0x2e0] sm:$0xff] %v1062
        %1848 = vst [vmem:[%s312 + $0x2e8] sm:$0xff] %v1064
        %1849 = vst [vmem:[%s312 + $0x2f0] sm:$0xff] %v1511
        %1850 = vst [vmem:[%s312 + $0x2f8] sm:$0xff] %v1513
        %1851 = vst [vmem:[%s312 + $0x300] sm:$0xff] %v1068
        %1852 = vst [vmem:[%s312 + $0x308] sm:$0xff] %v1070
        %1853 = vst [vmem:[%s312 + $0x310] sm:$0xff] %v1517
        %1854 = vst [vmem:[%s312 + $0x318] sm:$0xff] %v1519
        %1855 = vst [vmem:[%s312 + $0x320] sm:$0xff] %v1074
        %1856 = vst [vmem:[%s312 + $0x328] sm:$0xff] %v1076
        %1857 = vst [vmem:[%s312 + $0x330] sm:$0xff] %v1523
        %1858 = vst [vmem:[%s312 + $0x338] sm:$0xff] %v1525
        %1859 = vst [vmem:[%s312 + $0x340] sm:$0xff] %v1080
        %1860 = vst [vmem:[%s312 + $0x348] sm:$0xff] %v1082
        %1861 = vst [vmem:[%s312 + $0x350] sm:$0xff] %v1529
        %1862 = vst [vmem:[%s312 + $0x358] sm:$0xff] %v1531
        %1863 = vst [vmem:[%s312 + $0x360] sm:$0xff] %v1086
        %1864 = vst [vmem:[%s312 + $0x368] sm:$0xff] %v1088
        %1865 = vst [vmem:[%s312 + $0x370] sm:$0xff] %v1535
        %1866 = vst [vmem:[%s312 + $0x378] sm:$0xff] %v1537
        %1867 = vst [vmem:[%s312 + $0x380] sm:$0xff] %v1092
        %1868 = vst [vmem:[%s312 + $0x388] sm:$0xff] %v1094
        %1869 = vst [vmem:[%s312 + $0x390] sm:$0xff] %v1541
        %1870 = vst [vmem:[%s312 + $0x398] sm:$0xff] %v1543
        %1871 = vst [vmem:[%s312 + $0x3a0] sm:$0xff] %v1098
        %1872 = vst [vmem:[%s312 + $0x3a8] sm:$0xff] %v1100
        %1873 = vst [vmem:[%s312 + $0x3b0] sm:$0xff] %v1547
        %1874 = vst [vmem:[%s312 + $0x3b8] sm:$0xff] %v1549
        %1875 = vst [vmem:[%s312 + $0x3c0] sm:$0xff] %v1104
        %1876 = vst [vmem:[%s312 + $0x3c8] sm:$0xff] %v1106
        %1877 = vst [vmem:[%s312 + $0x3d0] sm:$0xff] %v1553
        %1878 = vst [vmem:[%s312 + $0x3d8] sm:$0xff] %v1555
        %1879 = vst [vmem:[%s312 + $0x3e0] sm:$0xff] %v1110
        %1880 = vst [vmem:[%s312 + $0x3e8] sm:$0xff] %v1112
        %1881 = vst [vmem:[%s312 + $0x3f0] sm:$0xff] %v1559
        %1882 = vst [vmem:[%s312 + $0x3f8] sm:$0xff] %v1561
        %1883 = vst [vmem:[%s312 + $0x400] sm:$0xff] %v1116
        %1884 = vst [vmem:[%s312 + $0x408] sm:$0xff] %v1118
        %1885 = vst [vmem:[%s312 + $0x410] sm:$0xff] %v1565
        %1886 = vst [vmem:[%s312 + $0x418] sm:$0xff] %v1567
        %1887 = vst [vmem:[%s312 + $0x420] sm:$0xff] %v1122
        %1888 = vst [vmem:[%s312 + $0x428] sm:$0xff] %v1124
        %1889 = vst [vmem:[%s312 + $0x430] sm:$0xff] %v1571
        %1890 = vst [vmem:[%s312 + $0x438] sm:$0xff] %v1573
        %1891 = vst [vmem:[%s312 + $0x440] sm:$0xff] %v1128
        %1892 = vst [vmem:[%s312 + $0x448] sm:$0xff] %v1130
        %1893 = vst [vmem:[%s312 + $0x450] sm:$0xff] %v1577
        %1894 = vst [vmem:[%s312 + $0x458] sm:$0xff] %v1579
        %1895 = vst [vmem:[%s312 + $0x460] sm:$0xff] %v1134
        %1896 = vst [vmem:[%s312 + $0x468] sm:$0xff] %v1136
        %1897 = vst [vmem:[%s312 + $0x470] sm:$0xff] %v1583
        %1898 = vst [vmem:[%s312 + $0x478] sm:$0xff] %v1585
        %1899 = vst [vmem:[%s312 + $0x480] sm:$0xff] %v1140
        %1900 = vst [vmem:[%s312 + $0x488] sm:$0xff] %v1142
        %1901 = vst [vmem:[%s312 + $0x490] sm:$0xff] %v1589
        %1902 = vst [vmem:[%s312 + $0x498] sm:$0xff] %v1591
        %1903 = vst [vmem:[%s312 + $0x4a0] sm:$0xff] %v1146
        %1904 = vst [vmem:[%s312 + $0x4a8] sm:$0xff] %v1148
        %1905 = vst [vmem:[%s312 + $0x4b0] sm:$0xff] %v1595
        %1906 = vst [vmem:[%s312 + $0x4b8] sm:$0xff] %v1597
        %1907 = vst [vmem:[%s312 + $0x4c0] sm:$0xff] %v1152
        %1908 = vst [vmem:[%s312 + $0x4c8] sm:$0xff] %v1154
        %1909 = vst [vmem:[%s312 + $0x4d0] sm:$0xff] %v1601
        %1910 = vst [vmem:[%s312 + $0x4d8] sm:$0xff] %v1603
        %1911 = vst [vmem:[%s312 + $0x4e0] sm:$0xff] %v1158
        %1912 = vst [vmem:[%s312 + $0x4e8] sm:$0xff] %v1160
        %1913 = vst [vmem:[%s312 + $0x4f0] sm:$0xff] %v1607
        %1914 = vst [vmem:[%s312 + $0x4f8] sm:$0xff] %v1609
        %1915 = vst [vmem:[%s312 + $0x500] sm:$0xff] %v1164
        %1916 = vst [vmem:[%s312 + $0x508] sm:$0xff] %v1166
        %1917 = vst [vmem:[%s312 + $0x510] sm:$0xff] %v1613
        %1918 = vst [vmem:[%s312 + $0x518] sm:$0xff] %v1615
        %1919 = vst [vmem:[%s312 + $0x520] sm:$0xff] %v1170
        %1920 = vst [vmem:[%s312 + $0x528] sm:$0xff] %v1172
        %1921 = vst [vmem:[%s312 + $0x530] sm:$0xff] %v1619
        %1922 = vst [vmem:[%s312 + $0x538] sm:$0xff] %v1621
        %1923 = vst [vmem:[%s312 + $0x540] sm:$0xff] %v1176
        %1924 = vst [vmem:[%s312 + $0x548] sm:$0xff] %v1178
        %1925 = vst [vmem:[%s312 + $0x550] sm:$0xff] %v1625
        %1926 = vst [vmem:[%s312 + $0x558] sm:$0xff] %v1627
        %1927 = vst [vmem:[%s312 + $0x560] sm:$0xff] %v1182
        %1928 = vst [vmem:[%s312 + $0x568] sm:$0xff] %v1184
        %1929 = vst [vmem:[%s312 + $0x570] sm:$0xff] %v1631
        %1930 = vst [vmem:[%s312 + $0x578] sm:$0xff] %v1633
        %1931 = vst [vmem:[%s312 + $0x580] sm:$0xff] %v1188
        %1932 = vst [vmem:[%s312 + $0x588] sm:$0xff] %v1190
        %1933 = vst [vmem:[%s312 + $0x590] sm:$0xff] %v1637
        %1934 = vst [vmem:[%s312 + $0x598] sm:$0xff] %v1639
        %1935 = vst [vmem:[%s312 + $0x5a0] sm:$0xff] %v1194
        %1936 = vst [vmem:[%s312 + $0x5a8] sm:$0xff] %v1196
        %1937 = vst [vmem:[%s312 + $0x5b0] sm:$0xff] %v1643
        %1938 = vst [vmem:[%s312 + $0x5b8] sm:$0xff] %v1645
        %1939 = vst [vmem:[%s312 + $0x5c0] sm:$0xff] %v1200
        %1940 = vst [vmem:[%s312 + $0x5c8] sm:$0xff] %v1202
        %1941 = vst [vmem:[%s312 + $0x5d0] sm:$0xff] %v1649
        %1942 = vst [vmem:[%s312 + $0x5d8] sm:$0xff] %v1651
        %1943 = vst [vmem:[%s312 + $0x5e0] sm:$0xff] %v1206
        %1944 = vst [vmem:[%s312 + $0x5e8] sm:$0xff] %v1208
        %1945 = vst [vmem:[%s312 + $0x5f0] sm:$0xff] %v1655
        %1946 = vst [vmem:[%s312 + $0x5f8] sm:$0xff] %v1657
        %1947 = vst [vmem:[%s312 + $0x600] sm:$0xff] %v1212
        %1948 = vst [vmem:[%s312 + $0x608] sm:$0xff] %v1214
        %1949 = vst [vmem:[%s312 + $0x610] sm:$0xff] %v1661
        %1950 = vst [vmem:[%s312 + $0x618] sm:$0xff] %v1663
        %1951 = vst [vmem:[%s312 + $0x620] sm:$0xff] %v1218
        %1952 = vst [vmem:[%s312 + $0x628] sm:$0xff] %v1220
        %1953 = vst [vmem:[%s312 + $0x630] sm:$0xff] %v1667
        %1954 = vst [vmem:[%s312 + $0x638] sm:$0xff] %v1669
        %1955 = vst [vmem:[%s312 + $0x640] sm:$0xff] %v1224
        %1956 = vst [vmem:[%s312 + $0x648] sm:$0xff] %v1226
        %1957 = vst [vmem:[%s312 + $0x650] sm:$0xff] %v1673
        %1958 = vst [vmem:[%s312 + $0x658] sm:$0xff] %v1675
        %1959 = vst [vmem:[%s312 + $0x660] sm:$0xff] %v1230
        %1960 = vst [vmem:[%s312 + $0x668] sm:$0xff] %v1232
        %1961 = vst [vmem:[%s312 + $0x670] sm:$0xff] %v1679
        %1962 = vst [vmem:[%s312 + $0x678] sm:$0xff] %v1681
        %1963 = vst [vmem:[%s312 + $0x680] sm:$0xff] %v1236
        %1964 = vst [vmem:[%s312 + $0x688] sm:$0xff] %v1238
        %1965 = vst [vmem:[%s312 + $0x690] sm:$0xff] %v1685
        %1966 = vst [vmem:[%s312 + $0x698] sm:$0xff] %v1687
        %1967 = vst [vmem:[%s312 + $0x6a0] sm:$0xff] %v1242
        %1968 = vst [vmem:[%s312 + $0x6a8] sm:$0xff] %v1244
        %1969 = vst [vmem:[%s312 + $0x6b0] sm:$0xff] %v1691
        %1970 = vst [vmem:[%s312 + $0x6b8] sm:$0xff] %v1693
        %1971 = vst [vmem:[%s312 + $0x6c0] sm:$0xff] %v1248
        %1972 = vst [vmem:[%s312 + $0x6c8] sm:$0xff] %v1250
        %1973 = vst [vmem:[%s312 + $0x6d0] sm:$0xff] %v1697
        %1974 = vst [vmem:[%s312 + $0x6d8] sm:$0xff] %v1699
        %1975 = vst [vmem:[%s312 + $0x6e0] sm:$0xff] %v1254
        %1976 = vst [vmem:[%s312 + $0x6e8] sm:$0xff] %v1256
        %1977 = vst [vmem:[%s312 + $0x6f0] sm:$0xff] %v1703
        %1978 = vst [vmem:[%s312 + $0x6f8] sm:$0xff] %v1705
        %1979 = vst [vmem:[%s312 + $0x700] sm:$0xff] %v1260
        %1980 = vst [vmem:[%s312 + $0x708] sm:$0xff] %v1262
        %1981 = vst [vmem:[%s312 + $0x710] sm:$0xff] %v1709
        %1982 = vst [vmem:[%s312 + $0x718] sm:$0xff] %v1711
        %1983 = vst [vmem:[%s312 + $0x720] sm:$0xff] %v1266
        %1984 = vst [vmem:[%s312 + $0x728] sm:$0xff] %v1268
        %1985 = vst [vmem:[%s312 + $0x730] sm:$0xff] %v1715
        %1986 = vst [vmem:[%s312 + $0x738] sm:$0xff] %v1717
        %1987 = vst [vmem:[%s312 + $0x740] sm:$0xff] %v1272
        %1988 = vst [vmem:[%s312 + $0x748] sm:$0xff] %v1274
        %1989 = vst [vmem:[%s312 + $0x750] sm:$0xff] %v1721
        %1990 = vst [vmem:[%s312 + $0x758] sm:$0xff] %v1723
        %1991 = vst [vmem:[%s312 + $0x760] sm:$0xff] %v1278
        %1992 = vst [vmem:[%s312 + $0x768] sm:$0xff] %v1280
        %1993 = vst [vmem:[%s312 + $0x770] sm:$0xff] %v1727
        %1994 = vst [vmem:[%s312 + $0x778] sm:$0xff] %v1729
        %1995 = vst [vmem:[%s312 + $0x780] sm:$0xff] %v1284
        %1996 = vst [vmem:[%s312 + $0x788] sm:$0xff] %v1286
        %1997 = vst [vmem:[%s312 + $0x790] sm:$0xff] %v1733
        %1998 = vst [vmem:[%s312 + $0x798] sm:$0xff] %v1735
        %1999 = vst [vmem:[%s312 + $0x7a0] sm:$0xff] %v1290
        %2000 = vst [vmem:[%s312 + $0x7a8] sm:$0xff] %v1292
        %2001 = vst [vmem:[%s312 + $0x7b0] sm:$0xff] %v1739
        %2002 = vst [vmem:[%s312 + $0x7b8] sm:$0xff] %v1741
        %2003 = vst [vmem:[%s312 + $0x7c0] sm:$0xff] %v1296
        %2004 = vst [vmem:[%s312 + $0x7c8] sm:$0xff] %v1298
        %2005 = vst [vmem:[%s312 + $0x7d0] sm:$0xff] %v1745
        %2006 = vst [vmem:[%s312 + $0x7d8] sm:$0xff] %v1747
        %2007 = vst [vmem:[%s312 + $0x7e0] sm:$0xff] %v1302
        %2008 = vst [vmem:[%s312 + $0x7e8] sm:$0xff] %v1304
        %2009 = vst [vmem:[%s312 + $0x7f0] sm:$0xff] %v1751
        %2010 = vst [vmem:[%s312 + $0x7f8] sm:$0xff] %v1753
        %s2011 = sand.u32 %s151, 1
        %s2012 = scalar_lea.sflag [#allocation5], %s2011
        %s2013 = sand.u32 %s151, 1
        %s2014 = smul.addr %s2013, 2048
        %s2015 = scalar_lea.vmem [#allocation11], %s2014
        // Predicated region
        $region57: #{tpu_custom_call.1} parent=35 // pred_check
          %p2016 = pneg %p161
        $region58: #{tpu_custom_call.1} parent=35 // pred_check_branch
          %2018 = sbr.rel (%p2016) target = $region60
        $region59: #{tpu_custom_call.1} parent=35 // pred_region
          %s2019 = smul.u32 64, %s29
          %s2020 = smul.u32 4, %s30
          %s2022 = ssub.s32 32768, 32768
          %2023 = vsyncadd %s2012, %s2022
          %s2024 = smul.addr %s2019, 4
          %s2025 = sadd.s32 %s2020, %s2024
          %s2026 = smul.addr %s2025, 128
          %s2027 = scalar_lea.hbm %s4, %s2026
          %s2028 = sshll.u32 %s2015, 4
          %s2029 = int_to_ptr.vmem [resolvable:$true] %s2028
          %2034 = dma.vmem_to_hbm [thread:$0]  %s2029, 32768, %s2027, %s2012, 512, 512, 32
        $region60: #{tpu_custom_call.1} parent=35 // pred_fallthru
          _
      $region36: #{tpu_custom_call.1} parent=5 // pred_fallthru
        _
      %p2035 = scmp.le.s32.totalorder 2, %s20
      // Predicated region
      $region61: #{tpu_custom_call.1} parent=5 // pred_check
        %p2036 = pneg %p2035
      $region62: #{tpu_custom_call.1} parent=5 // pred_check_branch
        %2038 = sbr.rel (%p2036) target = $region64
      $region63: #{tpu_custom_call.1} parent=5 // pred_region
        %s2039 = ssub.s32 %s20, 2
        // Predicated region
        $region65: #{tpu_custom_call.1} parent=63 // pred_check
          %p2040 = pneg %p167
        $region66: #{tpu_custom_call.1} parent=63 // pred_check_branch
          %2042 = sbr.rel (%p2040) target = $region68
        $region67: #{tpu_custom_call.1} parent=63 // pred_region
          %s2043 = sand.u32 %s152, 1
          %s2044 = scalar_lea.sflag [#allocation5], %s2043
          %s2045 = sand.u32 %s152, 1
          %s2046 = smul.addr %s2045, 2048
          %s2047 = scalar_lea.vmem [#allocation11], %s2046
          %2048 = dma.done %s2044, 32768
        $region68: #{tpu_custom_call.1} parent=63 // pred_fallthru
          _
      $region64: #{tpu_custom_call.1} parent=5 // pred_fallthru
        _
    $region6: #{tpu_custom_call.1} parent=1 // loop_footer
      %s24 = sadd.s32 1, %s20
    $region7: #{tpu_custom_call.1} parent=1 // loop_footer_branch
      %19 = sbr.rel target = $region3
    $region8: #{tpu_custom_call.1} parent=1 // loop_exit
      _
    %2049 = vsyncpa [#allocation4], 1
    %s2050 = scalar_lea.sflag [#allocation4], 1
    %2051 = vsyncpa %s2050, 1
    %2052 = vsyncpa [#allocation7], 1
    %s2053 = scalar_lea.sflag [#allocation7], 1
    %2054 = vsyncpa %s2053, 1
    %2055 = vsyncpa [#allocation10], 1
    %2056 = vsyncpa [#allocation5], 1
    %s2057 = scalar_lea.sflag [#allocation5], 1
    %2058 = vsyncpa %s2057, 1

</llo_original>
